<compile_context>
chip_gen: v5e
topology: v5e:2x2
jax: 0.10.0
libtpu: 0.0.40
codegen_flags: <defaults>
</compile_context>

<pallas_src>
import jax
import jax.numpy as jnp
from jax.experimental import pallas as pl
from jax.experimental.pallas import tpu as pltpu


def _lstm_fc_kernel(x_ref, wih_ref, whh_ref, b_ref, wfc_ref, bfc_ref, out_ref, gx_ref):
    # x_ref:   (T*B, H)   bf16  time-major input sequence (feature dim zero-padded to H)
    # wih_ref: (L, H, 4H) bf16  input->gates weights (transposed, gate cols [i,f,o,g])
    # whh_ref: (L, H, 4H) bf16  hidden->gates weights (transposed, gate cols [i,f,o,g])
    # b_ref:   (L, 1, 4H) f32   combined bias (b_ih + b_hh), gate cols [i,f,o,g]
    # wfc_ref: (H, 128)   bf16  fc weight (transposed, zero-padded to 128 lanes)
    # bfc_ref: (1, 128)   f32   fc bias (zero-padded to 128 lanes)
    # out_ref: (B, 128)   f32   lane-dense output slab (real columns sliced by wrapper)
    # gx_ref:  (T*B, 4H)  f32   VMEM scratch: per-timestep gate pre-activations slab
    TB, H = x_ref.shape
    L = whh_ref.shape[0]
    B = out_ref.shape[0]
    T = TB // B

    # Layer-0 input projection: ONE time-independent (T*B,H)@(H,4H) matmul.
    gx_ref[...] = (jnp.dot(x_ref[...], wih_ref[0],
                           preferred_element_type=jnp.float32) + b_ref[0])

    h = jnp.zeros((B, H), jnp.float32)
    for l in range(L):
        whh = whh_ref[l]                       # (H, 4H) bf16, resident in VMEM
        if l + 1 < L:
            wih_next = wih_ref[l + 1]          # (H, 4H) bf16
            b_next = b_ref[l + 1]              # (1, 4H) f32

        h = jnp.zeros((B, H), jnp.float32)
        c = jnp.zeros((B, H), jnp.float32)
        # Serial recurrence: one small matmul + EUP-only nonlinearities per step.
        # T=8 -> static unroll; gate columns are pre-permuted to [i, f, o, g].
        for t in range(T):
            lo, hi = t * B, (t + 1) * B        # static slab slice (one (8,128) vreg)
            gates = gx_ref[lo:hi, :] + jnp.dot(
                h.astype(jnp.bfloat16), whh, preferred_element_type=jnp.float32)

            # sigmoid(x) = 0.5*tanh(0.5*x) + 0.5  -> stays entirely on the EUP slot.
            sig = 0.5 * jnp.tanh(0.5 * gates[:, :3 * H]) + 0.5
            i = sig[:, 0 * H:1 * H]
            f = sig[:, 1 * H:2 * H]
            o = sig[:, 2 * H:3 * H]
            g = jnp.tanh(gates[:, 3 * H:])

            c = f * c + i * g
            h = o * jnp.tanh(c)

            if l + 1 < L:
                # Wavefront: next layer's input projection for this timestep, written
                # back into the gates-slab slot just consumed.  Independent of the
                # recurrent matmul -> overlaps with it on the MXU.
                gx_ref[lo:hi, :] = (jnp.dot(h.astype(jnp.bfloat16), wih_next,
                                            preferred_element_type=jnp.float32)
                                    + b_next)

    # h == last-timestep hidden state of the top layer: ReLU -> Linear (lane-dense).
    last = jnp.maximum(h, 0.0)
    out_ref[...] = (jnp.dot(last.astype(jnp.bfloat16), wfc_ref[...],
                            preferred_element_type=jnp.float32) + bfc_ref[...])


def bitcoin_predictor_forward(x, kernel_params, output_size):
    """x: (B, T, input_size) f32. kernel_params from prepare_kernel_params."""
    wih, whh, b, wfc, bfc = kernel_params
    B, T, I = x.shape
    H = whh.shape[1]
    O_pad = wfc.shape[1]

    # Pad batch to a multiple of 8 sublanes and features to H (padded W_ih rows are
    # zero, so the math is identical; padded batch rows are discarded below).
    B_pad = max(8, ((B + 7) // 8) * 8)
    xp = jnp.pad(x.astype(jnp.float32), ((0, B_pad - B), (0, 0), (0, H - I)))
    # time-major, flattened (T*B_pad, H), bf16 for the MXU
    x_tm = jnp.transpose(xp, (1, 0, 2)).reshape(T * B_pad, H).astype(jnp.bfloat16)

    vmem = pl.BlockSpec(memory_space=pltpu.MemorySpace.VMEM)
    out = pl.pallas_call(
        _lstm_fc_kernel,
        out_shape=jax.ShapeDtypeStruct((B_pad, O_pad), jnp.float32),
        in_specs=[vmem] * 6,
        out_specs=vmem,
        scratch_shapes=[pltpu.VMEM((T * B_pad, 4 * H), jnp.float32)],
    )(x_tm, wih, whh, b, wfc, bfc)
    return out[:B, :output_size]


def init_torch_params(key, input_size, hidden_size, num_layers, output_size):
    """PyTorch-layout parameters with uniform(-1/sqrt(H), 1/sqrt(H)) init."""
    H = hidden_size
    scale = 1.0 / float(H) ** 0.5
    ks = jax.random.split(key, 4 * num_layers + 2)
    idx = 0
    layers = []
    for l in range(num_layers):
        in_dim = input_size if l == 0 else H
        w_ih = jax.random.uniform(ks[idx], (4 * H, in_dim), jnp.float32, -scale, scale); idx += 1
        w_hh = jax.random.uniform(ks[idx], (4 * H, H), jnp.float32, -scale, scale); idx += 1
        b_ih = jax.random.uniform(ks[idx], (4 * H,), jnp.float32, -scale, scale); idx += 1
        b_hh = jax.random.uniform(ks[idx], (4 * H,), jnp.float32, -scale, scale); idx += 1
        layers.append((w_ih, w_hh, b_ih, b_hh))
    w_fc = jax.random.uniform(ks[idx], (output_size, H), jnp.float32, -scale, scale); idx += 1
    b_fc = jax.random.uniform(ks[idx], (output_size,), jnp.float32, -scale, scale)
    return layers, (w_fc, b_fc)


def prepare_kernel_params(lstm_layers, fc, hidden_size):
    """Transpose, zero-pad layer-0 rows to H, permute gate cols [i,f,g,o]->[i,f,o,g],
    combine biases, pad the FC head to 128 output lanes, cast matmul operands to bf16."""
    H = hidden_size

    def reorder(w):  # last axis is 4H, blocked [i, f, g, o] -> [i, f, o, g]
        i, f, g, o = jnp.split(w, 4, axis=-1)
        return jnp.concatenate([i, f, o, g], axis=-1)

    wih_l, whh_l, b_l = [], [], []
    for (w_ih, w_hh, b_ih, b_hh) in lstm_layers:
        in_dim = w_ih.shape[1]
        if in_dim > H:
            raise ValueError("prepare_kernel_params assumes input_size <= hidden_size")
        w_ih_t = w_ih.T                                  # (in_dim, 4H)
        if in_dim < H:
            w_ih_t = jnp.pad(w_ih_t, ((0, H - in_dim), (0, 0)))
        wih_l.append(reorder(w_ih_t))
        whh_l.append(reorder(w_hh.T))
        b_l.append(reorder((b_ih + b_hh)[None, :]))

    w_fc, b_fc = fc
    O = w_fc.shape[0]
    O_pad = max(128, ((O + 127) // 128) * 128)           # lane-dense output store
    w_fc_t = jnp.pad(w_fc.T, ((0, 0), (0, O_pad - O)))   # (H, O_pad)
    b_fc_p = jnp.pad(b_fc[None, :], ((0, 0), (0, O_pad - O)))

    return (jnp.stack(wih_l).astype(jnp.bfloat16),
            jnp.stack(whh_l).astype(jnp.bfloat16),
            jnp.stack(b_l).astype(jnp.float32),
            w_fc_t.astype(jnp.bfloat16),
            b_fc_p.astype(jnp.float32))


def _reference(x, lstm_layers, fc, *, matmul_dtype=jnp.float32):
    """Pure-JAX reference with PyTorch LSTM semantics.

    matmul_dtype=jnp.bfloat16 reproduces the kernel's MXU-native bf16 matmuls
    (f32 accumulation, f32 state); jnp.float32 is the exact-module reference.
    """
    w_fc, b_fc = fc
    B, T, _ = x.shape
    H = lstm_layers[0][1].shape[1]
    seq = x.astype(jnp.float32)
    for (w_ih, w_hh, b_ih, b_hh) in lstm_layers:
        wih_t = w_ih.T.astype(matmul_dtype)
        whh_t = w_hh.T.astype(matmul_dtype)
        b = b_ih + b_hh
        h = jnp.zeros((B, H), jnp.float32)
        c = jnp.zeros((B, H), jnp.float32)
        outs = []
        for t in range(T):
            xt = seq[:, t, :]
            gates = (jnp.dot(xt.astype(matmul_dtype), wih_t, preferred_element_type=jnp.float32)
                     + jnp.dot(h.astype(matmul_dtype), whh_t, preferred_element_type=jnp.float32)
                     + b)
            i = jax.nn.sigmoid(gates[:, 0 * H:1 * H])
            f = jax.nn.sigmoid(gates[:, 1 * H:2 * H])
            g = jnp.tanh(gates[:, 2 * H:3 * H])
            o = jax.nn.sigmoid(gates[:, 3 * H:4 * H])
            c = f * c + i * g
            h = o * jnp.tanh(c)
            outs.append(h)
        seq = jnp.stack(outs, axis=1)
    last = jnp.maximum(seq[:, -1, :], 0.0)
    return (jnp.dot(last.astype(matmul_dtype), w_fc.T.astype(matmul_dtype),
                    preferred_element_type=jnp.float32) + b_fc)


if __name__ == "__main__":
    B, T = 2, 8
    input_size, hidden_size, num_layers, output_size = 4, 32, 2, 1

    key = jax.random.PRNGKey(0)
    k_param, k_x = jax.random.split(key)
    lstm_layers, fc = init_torch_params(k_param, input_size, hidden_size,
                                        num_layers, output_size)
    kparams = prepare_kernel_params(lstm_layers, fc, hidden_size)
    x = jax.random.normal(k_x, (B, T, input_size), jnp.float32)

    out = bitcoin_predictor_forward(x, kparams, output_size)
    out = jax.block_until_ready(out)
    assert out.shape == (B, output_size)

    # Tight check vs. a reference using the same bf16-operand / f32-accumulate matmuls.
    ref_bf16 = _reference(x, lstm_layers, fc, matmul_dtype=jnp.bfloat16)
    assert jnp.allclose(out, ref_bf16, atol=2e-3, rtol=2e-3)

    # Loose check vs. the full-f32 PyTorch-semantics reference (bf16 MXU precision).
    ref_f32 = _reference(x, lstm_layers, fc, matmul_dtype=jnp.float32)
    assert jnp.allclose(out, ref_f32, atol=5e-2, rtol=5e-2)

    print("KERNEL_OK")
</pallas_src>

<mosaic_0001>
module attributes {stable_mosaic.version = 11 : i64} {
  func.func @_lstm_fc_kernel(%arg0: memref<64x32xbf16, #tpu.memory_space<vmem>>, %arg1: memref<2x32x128xbf16, #tpu.memory_space<vmem>>, %arg2: memref<2x32x128xbf16, #tpu.memory_space<vmem>>, %arg3: memref<2x1x128xf32, #tpu.memory_space<vmem>>, %arg4: memref<32x128xbf16, #tpu.memory_space<vmem>>, %arg5: memref<1x128xf32, #tpu.memory_space<vmem>>, %arg6: memref<8x128xf32, #tpu.memory_space<vmem>>, %arg7: memref<64x128xf32, #tpu.memory_space<vmem>>) attributes {dimension_semantics = [], scalar_prefetch = 0 : i64, scratch_operands = 1 : i64, tpu.core_type = #tpu.core_type<tc>} {
    %c0 = arith.constant 0 : index
    %c0_0 = arith.constant 0 : index
    %0 = vector.load %arg0[%c0, %c0_0] : memref<64x32xbf16, #tpu.memory_space<vmem>>, vector<64x32xbf16>
    %c0_1 = arith.constant 0 : index
    %c0_2 = arith.constant 0 : index
    %c0_3 = arith.constant 0 : index
    %1 = vector.load %arg1[%c0_1, %c0_2, %c0_3] : memref<2x32x128xbf16, #tpu.memory_space<vmem>>, vector<1x32x128xbf16>
    %2 = vector.shape_cast %1 : vector<1x32x128xbf16> to vector<32x128xbf16>
    %cst = arith.constant dense<0.000000e+00> : vector<64x128xf32>
    %3 = tpu.matmul %0, %2, %cst {dimension_numbers = #tpu.dot_dimension_numbers<[1], [0], [0], [1], [0, 0, 1, 1], [], []>} : vector<64x32xbf16>, vector<32x128xbf16>, vector<64x128xf32> -> vector<64x128xf32>
    %c0_4 = arith.constant 0 : index
    %c0_5 = arith.constant 0 : index
    %c0_6 = arith.constant 0 : index
    %4 = vector.load %arg3[%c0_4, %c0_5, %c0_6] : memref<2x1x128xf32, #tpu.memory_space<vmem>>, vector<1x1x128xf32>
    %5 = vector.shape_cast %4 : vector<1x1x128xf32> to vector<1x128xf32>
    %6 = vector.broadcast %5 : vector<1x128xf32> to vector<64x128xf32>
    %7 = arith.addf %3, %6 : vector<64x128xf32>
    %c0_7 = arith.constant 0 : index
    %c0_8 = arith.constant 0 : index
    %8 = vector.load %arg7[%c0_7, %c0_8] : memref<64x128xf32, #tpu.memory_space<vmem>>, vector<64x128xf32>
    tpu.vector_store %arg7[%c0_7, %c0_8], %7 {strides = array<i32>} : memref<64x128xf32, #tpu.memory_space<vmem>>, vector<64x128xf32>,
    %c0_9 = arith.constant 0 : index
    %c0_10 = arith.constant 0 : index
    %c0_11 = arith.constant 0 : index
    %9 = vector.load %arg2[%c0_9, %c0_10, %c0_11] : memref<2x32x128xbf16, #tpu.memory_space<vmem>>, vector<1x32x128xbf16>
    %10 = vector.shape_cast %9 : vector<1x32x128xbf16> to vector<32x128xbf16>
    %c1 = arith.constant 1 : index
    %c0_12 = arith.constant 0 : index
    %c0_13 = arith.constant 0 : index
    %11 = vector.load %arg1[%c1, %c0_12, %c0_13] : memref<2x32x128xbf16, #tpu.memory_space<vmem>>, vector<1x32x128xbf16>
    %12 = vector.shape_cast %11 : vector<1x32x128xbf16> to vector<32x128xbf16>
    %c1_14 = arith.constant 1 : index
    %c0_15 = arith.constant 0 : index
    %c0_16 = arith.constant 0 : index
    %13 = vector.load %arg3[%c1_14, %c0_15, %c0_16] : memref<2x1x128xf32, #tpu.memory_space<vmem>>, vector<1x1x128xf32>
    %14 = vector.shape_cast %13 : vector<1x1x128xf32> to vector<1x128xf32>
    %cst_17 = arith.constant 0.000000e+00 : f32
    %15 = vector.broadcast %cst_17 : f32 to vector<8x32xf32>
    %cst_18 = arith.constant 0.000000e+00 : f32
    %16 = vector.broadcast %cst_18 : f32 to vector<8x32xf32>
    %c0_19 = arith.constant 0 : index
    %c0_20 = arith.constant 0 : index
    %17 = vector.load %arg7[%c0_19, %c0_20] : memref<64x128xf32, #tpu.memory_space<vmem>>, vector<8x128xf32>
    %18 = arith.truncf %15 : vector<8x32xf32> to vector<8x32xbf16>
    %cst_21 = arith.constant dense<0.000000e+00> : vector<8x128xf32>
    %19 = tpu.matmul %18, %10, %cst_21 {dimension_numbers = #tpu.dot_dimension_numbers<[1], [0], [0], [1], [0, 0, 1, 1], [], []>} : vector<8x32xbf16>, vector<32x128xbf16>, vector<8x128xf32> -> vector<8x128xf32>
    %20 = arith.addf %17, %19 : vector<8x128xf32>
    %21 = vector.extract_strided_slice %20 {offsets = [0, 0], sizes = [8, 96], strides = [1, 1]} : vector<8x128xf32> to vector<8x96xf32>
    %cst_22 = arith.constant 5.000000e-01 : f32
    %22 = vector.broadcast %cst_22 : f32 to vector<8x96xf32>
    %23 = arith.mulf %22, %21 : vector<8x96xf32>
    %24 = math.tanh %23 : vector<8x96xf32>
    %cst_23 = arith.constant 5.000000e-01 : f32
    %25 = vector.broadcast %cst_23 : f32 to vector<8x96xf32>
    %26 = arith.mulf %25, %24 : vector<8x96xf32>
    %cst_24 = arith.constant 5.000000e-01 : f32
    %27 = vector.broadcast %cst_24 : f32 to vector<8x96xf32>
    %28 = arith.addf %26, %27 : vector<8x96xf32>
    %29 = vector.extract_strided_slice %28 {offsets = [0, 0], sizes = [8, 32], strides = [1, 1]} : vector<8x96xf32> to vector<8x32xf32>
    %30 = vector.extract_strided_slice %28 {offsets = [0, 32], sizes = [8, 32], strides = [1, 1]} : vector<8x96xf32> to vector<8x32xf32>
    %31 = vector.extract_strided_slice %28 {offsets = [0, 64], sizes = [8, 32], strides = [1, 1]} : vector<8x96xf32> to vector<8x32xf32>
    %32 = vector.extract_strided_slice %20 {offsets = [0, 96], sizes = [8, 32], strides = [1, 1]} : vector<8x128xf32> to vector<8x32xf32>
    %33 = math.tanh %32 : vector<8x32xf32>
    %34 = arith.mulf %30, %16 : vector<8x32xf32>
    %35 = arith.mulf %29, %33 : vector<8x32xf32>
    %36 = arith.addf %34, %35 : vector<8x32xf32>
    %37 = math.tanh %36 : vector<8x32xf32>
    %38 = arith.mulf %31, %37 : vector<8x32xf32>
    %39 = arith.truncf %38 : vector<8x32xf32> to vector<8x32xbf16>
    %cst_25 = arith.constant dense<0.000000e+00> : vector<8x128xf32>
    %40 = tpu.matmul %39, %12, %cst_25 {dimension_numbers = #tpu.dot_dimension_numbers<[1], [0], [0], [1], [0, 0, 1, 1], [], []>} : vector<8x32xbf16>, vector<32x128xbf16>, vector<8x128xf32> -> vector<8x128xf32>
    %41 = vector.broadcast %14 : vector<1x128xf32> to vector<8x128xf32>
    %42 = arith.addf %40, %41 : vector<8x128xf32>
    %c0_26 = arith.constant 0 : index
    %c0_27 = arith.constant 0 : index
    %43 = vector.load %arg7[%c0_26, %c0_27] : memref<64x128xf32, #tpu.memory_space<vmem>>, vector<8x128xf32>
    tpu.vector_store %arg7[%c0_26, %c0_27], %42 {strides = array<i32>} : memref<64x128xf32, #tpu.memory_space<vmem>>, vector<8x128xf32>,
    %c8 = arith.constant 8 : index
    %c0_28 = arith.constant 0 : index
    %44 = vector.load %arg7[%c8, %c0_28] : memref<64x128xf32, #tpu.memory_space<vmem>>, vector<8x128xf32>
    %45 = arith.truncf %38 : vector<8x32xf32> to vector<8x32xbf16>
    %cst_29 = arith.constant dense<0.000000e+00> : vector<8x128xf32>
    %46 = tpu.matmul %45, %10, %cst_29 {dimension_numbers = #tpu.dot_dimension_numbers<[1], [0], [0], [1], [0, 0, 1, 1], [], []>} : vector<8x32xbf16>, vector<32x128xbf16>, vector<8x128xf32> -> vector<8x128xf32>
    %47 = arith.addf %44, %46 : vector<8x128xf32>
    %48 = vector.extract_strided_slice %47 {offsets = [0, 0], sizes = [8, 96], strides = [1, 1]} : vector<8x128xf32> to vector<8x96xf32>
    %cst_30 = arith.constant 5.000000e-01 : f32
    %49 = vector.broadcast %cst_30 : f32 to vector<8x96xf32>
    %50 = arith.mulf %49, %48 : vector<8x96xf32>
    %51 = math.tanh %50 : vector<8x96xf32>
    %cst_31 = arith.constant 5.000000e-01 : f32
    %52 = vector.broadcast %cst_31 : f32 to vector<8x96xf32>
    %53 = arith.mulf %52, %51 : vector<8x96xf32>
    %cst_32 = arith.constant 5.000000e-01 : f32
    %54 = vector.broadcast %cst_32 : f32 to vector<8x96xf32>
    %55 = arith.addf %53, %54 : vector<8x96xf32>
    %56 = vector.extract_strided_slice %55 {offsets = [0, 0], sizes = [8, 32], strides = [1, 1]} : vector<8x96xf32> to vector<8x32xf32>
    %57 = vector.extract_strided_slice %55 {offsets = [0, 32], sizes = [8, 32], strides = [1, 1]} : vector<8x96xf32> to vector<8x32xf32>
    %58 = vector.extract_strided_slice %55 {offsets = [0, 64], sizes = [8, 32], strides = [1, 1]} : vector<8x96xf32> to vector<8x32xf32>
    %59 = vector.extract_strided_slice %47 {offsets = [0, 96], sizes = [8, 32], strides = [1, 1]} : vector<8x128xf32> to vector<8x32xf32>
    %60 = math.tanh %59 : vector<8x32xf32>
    %61 = arith.mulf %57, %36 : vector<8x32xf32>
    %62 = arith.mulf %56, %60 : vector<8x32xf32>
    %63 = arith.addf %61, %62 : vector<8x32xf32>
    %64 = math.tanh %63 : vector<8x32xf32>
    %65 = arith.mulf %58, %64 : vector<8x32xf32>
    %66 = arith.truncf %65 : vector<8x32xf32> to vector<8x32xbf16>
    %cst_33 = arith.constant dense<0.000000e+00> : vector<8x128xf32>
    %67 = tpu.matmul %66, %12, %cst_33 {dimension_numbers = #tpu.dot_dimension_numbers<[1], [0], [0], [1], [0, 0, 1, 1], [], []>} : vector<8x32xbf16>, vector<32x128xbf16>, vector<8x128xf32> -> vector<8x128xf32>
    %68 = vector.broadcast %14 : vector<1x128xf32> to vector<8x128xf32>
    %69 = arith.addf %67, %68 : vector<8x128xf32>
    %c8_34 = arith.constant 8 : index
    %c0_35 = arith.constant 0 : index
    %70 = vector.load %arg7[%c8_34, %c0_35] : memref<64x128xf32, #tpu.memory_space<vmem>>, vector<8x128xf32>
    tpu.vector_store %arg7[%c8_34, %c0_35], %69 {strides = array<i32>} : memref<64x128xf32, #tpu.memory_space<vmem>>, vector<8x128xf32>,
    %c16 = arith.constant 16 : index
    %c0_36 = arith.constant 0 : index
    %71 = vector.load %arg7[%c16, %c0_36] : memref<64x128xf32, #tpu.memory_space<vmem>>, vector<8x128xf32>
    %72 = arith.truncf %65 : vector<8x32xf32> to vector<8x32xbf16>
    %cst_37 = arith.constant dense<0.000000e+00> : vector<8x128xf32>
    %73 = tpu.matmul %72, %10, %cst_37 {dimension_numbers = #tpu.dot_dimension_numbers<[1], [0], [0], [1], [0, 0, 1, 1], [], []>} : vector<8x32xbf16>, vector<32x128xbf16>, vector<8x128xf32> -> vector<8x128xf32>
    %74 = arith.addf %71, %73 : vector<8x128xf32>
    %75 = vector.extract_strided_slice %74 {offsets = [0, 0], sizes = [8, 96], strides = [1, 1]} : vector<8x128xf32> to vector<8x96xf32>
    %cst_38 = arith.constant 5.000000e-01 : f32
    %76 = vector.broadcast %cst_38 : f32 to vector<8x96xf32>
    %77 = arith.mulf %76, %75 : vector<8x96xf32>
    %78 = math.tanh %77 : vector<8x96xf32>
    %cst_39 = arith.constant 5.000000e-01 : f32
    %79 = vector.broadcast %cst_39 : f32 to vector<8x96xf32>
    %80 = arith.mulf %79, %78 : vector<8x96xf32>
    %cst_40 = arith.constant 5.000000e-01 : f32
    %81 = vector.broadcast %cst_40 : f32 to vector<8x96xf32>
    %82 = arith.addf %80, %81 : vector<8x96xf32>
    %83 = vector.extract_strided_slice %82 {offsets = [0, 0], sizes = [8, 32], strides = [1, 1]} : vector<8x96xf32> to vector<8x32xf32>
    %84 = vector.extract_strided_slice %82 {offsets = [0, 32], sizes = [8, 32], strides = [1, 1]} : vector<8x96xf32> to vector<8x32xf32>
    %85 = vector.extract_strided_slice %82 {offsets = [0, 64], sizes = [8, 32], strides = [1, 1]} : vector<8x96xf32> to vector<8x32xf32>
    %86 = vector.extract_strided_slice %74 {offsets = [0, 96], sizes = [8, 32], strides = [1, 1]} : vector<8x128xf32> to vector<8x32xf32>
    %87 = math.tanh %86 : vector<8x32xf32>
    %88 = arith.mulf %84, %63 : vector<8x32xf32>
    %89 = arith.mulf %83, %87 : vector<8x32xf32>
    %90 = arith.addf %88, %89 : vector<8x32xf32>
    %91 = math.tanh %90 : vector<8x32xf32>
    %92 = arith.mulf %85, %91 : vector<8x32xf32>
    %93 = arith.truncf %92 : vector<8x32xf32> to vector<8x32xbf16>
    %cst_41 = arith.constant dense<0.000000e+00> : vector<8x128xf32>
    %94 = tpu.matmul %93, %12, %cst_41 {dimension_numbers = #tpu.dot_dimension_numbers<[1], [0], [0], [1], [0, 0, 1, 1], [], []>} : vector<8x32xbf16>, vector<32x128xbf16>, vector<8x128xf32> -> vector<8x128xf32>
    %95 = vector.broadcast %14 : vector<1x128xf32> to vector<8x128xf32>
    %96 = arith.addf %94, %95 : vector<8x128xf32>
    %c16_42 = arith.constant 16 : index
    %c0_43 = arith.constant 0 : index
    %97 = vector.load %arg7[%c16_42, %c0_43] : memref<64x128xf32, #tpu.memory_space<vmem>>, vector<8x128xf32>
    tpu.vector_store %arg7[%c16_42, %c0_43], %96 {strides = array<i32>} : memref<64x128xf32, #tpu.memory_space<vmem>>, vector<8x128xf32>,
    %c24 = arith.constant 24 : index
    %c0_44 = arith.constant 0 : index
    %98 = vector.load %arg7[%c24, %c0_44] : memref<64x128xf32, #tpu.memory_space<vmem>>, vector<8x128xf32>
    %99 = arith.truncf %92 : vector<8x32xf32> to vector<8x32xbf16>
    %cst_45 = arith.constant dense<0.000000e+00> : vector<8x128xf32>
    %100 = tpu.matmul %99, %10, %cst_45 {dimension_numbers = #tpu.dot_dimension_numbers<[1], [0], [0], [1], [0, 0, 1, 1], [], []>} : vector<8x32xbf16>, vector<32x128xbf16>, vector<8x128xf32> -> vector<8x128xf32>
    %101 = arith.addf %98, %100 : vector<8x128xf32>
    %102 = vector.extract_strided_slice %101 {offsets = [0, 0], sizes = [8, 96], strides = [1, 1]} : vector<8x128xf32> to vector<8x96xf32>
    %cst_46 = arith.constant 5.000000e-01 : f32
    %103 = vector.broadcast %cst_46 : f32 to vector<8x96xf32>
    %104 = arith.mulf %103, %102 : vector<8x96xf32>
    %105 = math.tanh %104 : vector<8x96xf32>
    %cst_47 = arith.constant 5.000000e-01 : f32
    %106 = vector.broadcast %cst_47 : f32 to vector<8x96xf32>
    %107 = arith.mulf %106, %105 : vector<8x96xf32>
    %cst_48 = arith.constant 5.000000e-01 : f32
    %108 = vector.broadcast %cst_48 : f32 to vector<8x96xf32>
    %109 = arith.addf %107, %108 : vector<8x96xf32>
    %110 = vector.extract_strided_slice %109 {offsets = [0, 0], sizes = [8, 32], strides = [1, 1]} : vector<8x96xf32> to vector<8x32xf32>
    %111 = vector.extract_strided_slice %109 {offsets = [0, 32], sizes = [8, 32], strides = [1, 1]} : vector<8x96xf32> to vector<8x32xf32>
    %112 = vector.extract_strided_slice %109 {offsets = [0, 64], sizes = [8, 32], strides = [1, 1]} : vector<8x96xf32> to vector<8x32xf32>
    %113 = vector.extract_strided_slice %101 {offsets = [0, 96], sizes = [8, 32], strides = [1, 1]} : vector<8x128xf32> to vector<8x32xf32>
    %114 = math.tanh %113 : vector<8x32xf32>
    %115 = arith.mulf %111, %90 : vector<8x32xf32>
    %116 = arith.mulf %110, %114 : vector<8x32xf32>
    %117 = arith.addf %115, %116 : vector<8x32xf32>
    %118 = math.tanh %117 : vector<8x32xf32>
    %119 = arith.mulf %112, %118 : vector<8x32xf32>
    %120 = arith.truncf %119 : vector<8x32xf32> to vector<8x32xbf16>
    %cst_49 = arith.constant dense<0.000000e+00> : vector<8x128xf32>
    %121 = tpu.matmul %120, %12, %cst_49 {dimension_numbers = #tpu.dot_dimension_numbers<[1], [0], [0], [1], [0, 0, 1, 1], [], []>} : vector<8x32xbf16>, vector<32x128xbf16>, vector<8x128xf32> -> vector<8x128xf32>
    %122 = vector.broadcast %14 : vector<1x128xf32> to vector<8x128xf32>
    %123 = arith.addf %121, %122 : vector<8x128xf32>
    %c24_50 = arith.constant 24 : index
    %c0_51 = arith.constant 0 : index
    %124 = vector.load %arg7[%c24_50, %c0_51] : memref<64x128xf32, #tpu.memory_space<vmem>>, vector<8x128xf32>
    tpu.vector_store %arg7[%c24_50, %c0_51], %123 {strides = array<i32>} : memref<64x128xf32, #tpu.memory_space<vmem>>, vector<8x128xf32>,
    %c32 = arith.constant 32 : index
    %c0_52 = arith.constant 0 : index
    %125 = vector.load %arg7[%c32, %c0_52] : memref<64x128xf32, #tpu.memory_space<vmem>>, vector<8x128xf32>
    %126 = arith.truncf %119 : vector<8x32xf32> to vector<8x32xbf16>
    %cst_53 = arith.constant dense<0.000000e+00> : vector<8x128xf32>
    %127 = tpu.matmul %126, %10, %cst_53 {dimension_numbers = #tpu.dot_dimension_numbers<[1], [0], [0], [1], [0, 0, 1, 1], [], []>} : vector<8x32xbf16>, vector<32x128xbf16>, vector<8x128xf32> -> vector<8x128xf32>
    %128 = arith.addf %125, %127 : vector<8x128xf32>
    %129 = vector.extract_strided_slice %128 {offsets = [0, 0], sizes = [8, 96], strides = [1, 1]} : vector<8x128xf32> to vector<8x96xf32>
    %cst_54 = arith.constant 5.000000e-01 : f32
    %130 = vector.broadcast %cst_54 : f32 to vector<8x96xf32>
    %131 = arith.mulf %130, %129 : vector<8x96xf32>
    %132 = math.tanh %131 : vector<8x96xf32>
    %cst_55 = arith.constant 5.000000e-01 : f32
    %133 = vector.broadcast %cst_55 : f32 to vector<8x96xf32>
    %134 = arith.mulf %133, %132 : vector<8x96xf32>
    %cst_56 = arith.constant 5.000000e-01 : f32
    %135 = vector.broadcast %cst_56 : f32 to vector<8x96xf32>
    %136 = arith.addf %134, %135 : vector<8x96xf32>
    %137 = vector.extract_strided_slice %136 {offsets = [0, 0], sizes = [8, 32], strides = [1, 1]} : vector<8x96xf32> to vector<8x32xf32>
    %138 = vector.extract_strided_slice %136 {offsets = [0, 32], sizes = [8, 32], strides = [1, 1]} : vector<8x96xf32> to vector<8x32xf32>
    %139 = vector.extract_strided_slice %136 {offsets = [0, 64], sizes = [8, 32], strides = [1, 1]} : vector<8x96xf32> to vector<8x32xf32>
    %140 = vector.extract_strided_slice %128 {offsets = [0, 96], sizes = [8, 32], strides = [1, 1]} : vector<8x128xf32> to vector<8x32xf32>
    %141 = math.tanh %140 : vector<8x32xf32>
    %142 = arith.mulf %138, %117 : vector<8x32xf32>
    %143 = arith.mulf %137, %141 : vector<8x32xf32>
    %144 = arith.addf %142, %143 : vector<8x32xf32>
    %145 = math.tanh %144 : vector<8x32xf32>
    %146 = arith.mulf %139, %145 : vector<8x32xf32>
    %147 = arith.truncf %146 : vector<8x32xf32> to vector<8x32xbf16>
    %cst_57 = arith.constant dense<0.000000e+00> : vector<8x128xf32>
    %148 = tpu.matmul %147, %12, %cst_57 {dimension_numbers = #tpu.dot_dimension_numbers<[1], [0], [0], [1], [0, 0, 1, 1], [], []>} : vector<8x32xbf16>, vector<32x128xbf16>, vector<8x128xf32> -> vector<8x128xf32>
    %149 = vector.broadcast %14 : vector<1x128xf32> to vector<8x128xf32>
    %150 = arith.addf %148, %149 : vector<8x128xf32>
    %c32_58 = arith.constant 32 : index
    %c0_59 = arith.constant 0 : index
    %151 = vector.load %arg7[%c32_58, %c0_59] : memref<64x128xf32, #tpu.memory_space<vmem>>, vector<8x128xf32>
    tpu.vector_store %arg7[%c32_58, %c0_59], %150 {strides = array<i32>} : memref<64x128xf32, #tpu.memory_space<vmem>>, vector<8x128xf32>,
    %c40 = arith.constant 40 : index
    %c0_60 = arith.constant 0 : index
    %152 = vector.load %arg7[%c40, %c0_60] : memref<64x128xf32, #tpu.memory_space<vmem>>, vector<8x128xf32>
    %153 = arith.truncf %146 : vector<8x32xf32> to vector<8x32xbf16>
    %cst_61 = arith.constant dense<0.000000e+00> : vector<8x128xf32>
    %154 = tpu.matmul %153, %10, %cst_61 {dimension_numbers = #tpu.dot_dimension_numbers<[1], [0], [0], [1], [0, 0, 1, 1], [], []>} : vector<8x32xbf16>, vector<32x128xbf16>, vector<8x128xf32> -> vector<8x128xf32>
    %155 = arith.addf %152, %154 : vector<8x128xf32>
    %156 = vector.extract_strided_slice %155 {offsets = [0, 0], sizes = [8, 96], strides = [1, 1]} : vector<8x128xf32> to vector<8x96xf32>
    %cst_62 = arith.constant 5.000000e-01 : f32
    %157 = vector.broadcast %cst_62 : f32 to vector<8x96xf32>
    %158 = arith.mulf %157, %156 : vector<8x96xf32>
    %159 = math.tanh %158 : vector<8x96xf32>
    %cst_63 = arith.constant 5.000000e-01 : f32
    %160 = vector.broadcast %cst_63 : f32 to vector<8x96xf32>
    %161 = arith.mulf %160, %159 : vector<8x96xf32>
    %cst_64 = arith.constant 5.000000e-01 : f32
    %162 = vector.broadcast %cst_64 : f32 to vector<8x96xf32>
    %163 = arith.addf %161, %162 : vector<8x96xf32>
    %164 = vector.extract_strided_slice %163 {offsets = [0, 0], sizes = [8, 32], strides = [1, 1]} : vector<8x96xf32> to vector<8x32xf32>
    %165 = vector.extract_strided_slice %163 {offsets = [0, 32], sizes = [8, 32], strides = [1, 1]} : vector<8x96xf32> to vector<8x32xf32>
    %166 = vector.extract_strided_slice %163 {offsets = [0, 64], sizes = [8, 32], strides = [1, 1]} : vector<8x96xf32> to vector<8x32xf32>
    %167 = vector.extract_strided_slice %155 {offsets = [0, 96], sizes = [8, 32], strides = [1, 1]} : vector<8x128xf32> to vector<8x32xf32>
    %168 = math.tanh %167 : vector<8x32xf32>
    %169 = arith.mulf %165, %144 : vector<8x32xf32>
    %170 = arith.mulf %164, %168 : vector<8x32xf32>
    %171 = arith.addf %169, %170 : vector<8x32xf32>
    %172 = math.tanh %171 : vector<8x32xf32>
    %173 = arith.mulf %166, %172 : vector<8x32xf32>
    %174 = arith.truncf %173 : vector<8x32xf32> to vector<8x32xbf16>
    %cst_65 = arith.constant dense<0.000000e+00> : vector<8x128xf32>
    %175 = tpu.matmul %174, %12, %cst_65 {dimension_numbers = #tpu.dot_dimension_numbers<[1], [0], [0], [1], [0, 0, 1, 1], [], []>} : vector<8x32xbf16>, vector<32x128xbf16>, vector<8x128xf32> -> vector<8x128xf32>
    %176 = vector.broadcast %14 : vector<1x128xf32> to vector<8x128xf32>
    %177 = arith.addf %175, %176 : vector<8x128xf32>
    %c40_66 = arith.constant 40 : index
    %c0_67 = arith.constant 0 : index
    %178 = vector.load %arg7[%c40_66, %c0_67] : memref<64x128xf32, #tpu.memory_space<vmem>>, vector<8x128xf32>
    tpu.vector_store %arg7[%c40_66, %c0_67], %177 {strides = array<i32>} : memref<64x128xf32, #tpu.memory_space<vmem>>, vector<8x128xf32>,
    %c48 = arith.constant 48 : index
    %c0_68 = arith.constant 0 : index
    %179 = vector.load %arg7[%c48, %c0_68] : memref<64x128xf32, #tpu.memory_space<vmem>>, vector<8x128xf32>
    %180 = arith.truncf %173 : vector<8x32xf32> to vector<8x32xbf16>
    %cst_69 = arith.constant dense<0.000000e+00> : vector<8x128xf32>
    %181 = tpu.matmul %180, %10, %cst_69 {dimension_numbers = #tpu.dot_dimension_numbers<[1], [0], [0], [1], [0, 0, 1, 1], [], []>} : vector<8x32xbf16>, vector<32x128xbf16>, vector<8x128xf32> -> vector<8x128xf32>
    %182 = arith.addf %179, %181 : vector<8x128xf32>
    %183 = vector.extract_strided_slice %182 {offsets = [0, 0], sizes = [8, 96], strides = [1, 1]} : vector<8x128xf32> to vector<8x96xf32>
    %cst_70 = arith.constant 5.000000e-01 : f32
    %184 = vector.broadcast %cst_70 : f32 to vector<8x96xf32>
    %185 = arith.mulf %184, %183 : vector<8x96xf32>
    %186 = math.tanh %185 : vector<8x96xf32>
    %cst_71 = arith.constant 5.000000e-01 : f32
    %187 = vector.broadcast %cst_71 : f32 to vector<8x96xf32>
    %188 = arith.mulf %187, %186 : vector<8x96xf32>
    %cst_72 = arith.constant 5.000000e-01 : f32
    %189 = vector.broadcast %cst_72 : f32 to vector<8x96xf32>
    %190 = arith.addf %188, %189 : vector<8x96xf32>
    %191 = vector.extract_strided_slice %190 {offsets = [0, 0], sizes = [8, 32], strides = [1, 1]} : vector<8x96xf32> to vector<8x32xf32>
    %192 = vector.extract_strided_slice %190 {offsets = [0, 32], sizes = [8, 32], strides = [1, 1]} : vector<8x96xf32> to vector<8x32xf32>
    %193 = vector.extract_strided_slice %190 {offsets = [0, 64], sizes = [8, 32], strides = [1, 1]} : vector<8x96xf32> to vector<8x32xf32>
    %194 = vector.extract_strided_slice %182 {offsets = [0, 96], sizes = [8, 32], strides = [1, 1]} : vector<8x128xf32> to vector<8x32xf32>
    %195 = math.tanh %194 : vector<8x32xf32>
    %196 = arith.mulf %192, %171 : vector<8x32xf32>
    %197 = arith.mulf %191, %195 : vector<8x32xf32>
    %198 = arith.addf %196, %197 : vector<8x32xf32>
    %199 = math.tanh %198 : vector<8x32xf32>
    %200 = arith.mulf %193, %199 : vector<8x32xf32>
    %201 = arith.truncf %200 : vector<8x32xf32> to vector<8x32xbf16>
    %cst_73 = arith.constant dense<0.000000e+00> : vector<8x128xf32>
    %202 = tpu.matmul %201, %12, %cst_73 {dimension_numbers = #tpu.dot_dimension_numbers<[1], [0], [0], [1], [0, 0, 1, 1], [], []>} : vector<8x32xbf16>, vector<32x128xbf16>, vector<8x128xf32> -> vector<8x128xf32>
    %203 = vector.broadcast %14 : vector<1x128xf32> to vector<8x128xf32>
    %204 = arith.addf %202, %203 : vector<8x128xf32>
    %c48_74 = arith.constant 48 : index
    %c0_75 = arith.constant 0 : index
    %205 = vector.load %arg7[%c48_74, %c0_75] : memref<64x128xf32, #tpu.memory_space<vmem>>, vector<8x128xf32>
    tpu.vector_store %arg7[%c48_74, %c0_75], %204 {strides = array<i32>} : memref<64x128xf32, #tpu.memory_space<vmem>>, vector<8x128xf32>,
    %c56 = arith.constant 56 : index
    %c0_76 = arith.constant 0 : index
    %206 = vector.load %arg7[%c56, %c0_76] : memref<64x128xf32, #tpu.memory_space<vmem>>, vector<8x128xf32>
    %207 = arith.truncf %200 : vector<8x32xf32> to vector<8x32xbf16>
    %cst_77 = arith.constant dense<0.000000e+00> : vector<8x128xf32>
    %208 = tpu.matmul %207, %10, %cst_77 {dimension_numbers = #tpu.dot_dimension_numbers<[1], [0], [0], [1], [0, 0, 1, 1], [], []>} : vector<8x32xbf16>, vector<32x128xbf16>, vector<8x128xf32> -> vector<8x128xf32>
    %209 = arith.addf %206, %208 : vector<8x128xf32>
    %210 = vector.extract_strided_slice %209 {offsets = [0, 0], sizes = [8, 96], strides = [1, 1]} : vector<8x128xf32> to vector<8x96xf32>
    %cst_78 = arith.constant 5.000000e-01 : f32
    %211 = vector.broadcast %cst_78 : f32 to vector<8x96xf32>
    %212 = arith.mulf %211, %210 : vector<8x96xf32>
    %213 = math.tanh %212 : vector<8x96xf32>
    %cst_79 = arith.constant 5.000000e-01 : f32
    %214 = vector.broadcast %cst_79 : f32 to vector<8x96xf32>
    %215 = arith.mulf %214, %213 : vector<8x96xf32>
    %cst_80 = arith.constant 5.000000e-01 : f32
    %216 = vector.broadcast %cst_80 : f32 to vector<8x96xf32>
    %217 = arith.addf %215, %216 : vector<8x96xf32>
    %218 = vector.extract_strided_slice %217 {offsets = [0, 0], sizes = [8, 32], strides = [1, 1]} : vector<8x96xf32> to vector<8x32xf32>
    %219 = vector.extract_strided_slice %217 {offsets = [0, 32], sizes = [8, 32], strides = [1, 1]} : vector<8x96xf32> to vector<8x32xf32>
    %220 = vector.extract_strided_slice %217 {offsets = [0, 64], sizes = [8, 32], strides = [1, 1]} : vector<8x96xf32> to vector<8x32xf32>
    %221 = vector.extract_strided_slice %209 {offsets = [0, 96], sizes = [8, 32], strides = [1, 1]} : vector<8x128xf32> to vector<8x32xf32>
    %222 = math.tanh %221 : vector<8x32xf32>
    %223 = arith.mulf %219, %198 : vector<8x32xf32>
    %224 = arith.mulf %218, %222 : vector<8x32xf32>
    %225 = arith.addf %223, %224 : vector<8x32xf32>
    %226 = math.tanh %225 : vector<8x32xf32>
    %227 = arith.mulf %220, %226 : vector<8x32xf32>
    %228 = arith.truncf %227 : vector<8x32xf32> to vector<8x32xbf16>
    %cst_81 = arith.constant dense<0.000000e+00> : vector<8x128xf32>
    %229 = tpu.matmul %228, %12, %cst_81 {dimension_numbers = #tpu.dot_dimension_numbers<[1], [0], [0], [1], [0, 0, 1, 1], [], []>} : vector<8x32xbf16>, vector<32x128xbf16>, vector<8x128xf32> -> vector<8x128xf32>
    %230 = vector.broadcast %14 : vector<1x128xf32> to vector<8x128xf32>
    %231 = arith.addf %229, %230 : vector<8x128xf32>
    %c56_82 = arith.constant 56 : index
    %c0_83 = arith.constant 0 : index
    %232 = vector.load %arg7[%c56_82, %c0_83] : memref<64x128xf32, #tpu.memory_space<vmem>>, vector<8x128xf32>
    tpu.vector_store %arg7[%c56_82, %c0_83], %231 {strides = array<i32>} : memref<64x128xf32, #tpu.memory_space<vmem>>, vector<8x128xf32>,
    %c1_84 = arith.constant 1 : index
    %c0_85 = arith.constant 0 : index
    %c0_86 = arith.constant 0 : index
    %233 = vector.load %arg2[%c1_84, %c0_85, %c0_86] : memref<2x32x128xbf16, #tpu.memory_space<vmem>>, vector<1x32x128xbf16>
    %234 = vector.shape_cast %233 : vector<1x32x128xbf16> to vector<32x128xbf16>
    %cst_87 = arith.constant 0.000000e+00 : f32
    %235 = vector.broadcast %cst_87 : f32 to vector<8x32xf32>
    %cst_88 = arith.constant 0.000000e+00 : f32
    %236 = vector.broadcast %cst_88 : f32 to vector<8x32xf32>
    %c0_89 = arith.constant 0 : index
    %c0_90 = arith.constant 0 : index
    %237 = vector.load %arg7[%c0_89, %c0_90] : memref<64x128xf32, #tpu.memory_space<vmem>>, vector<8x128xf32>
    %238 = arith.truncf %235 : vector<8x32xf32> to vector<8x32xbf16>
    %cst_91 = arith.constant dense<0.000000e+00> : vector<8x128xf32>
    %239 = tpu.matmul %238, %234, %cst_91 {dimension_numbers = #tpu.dot_dimension_numbers<[1], [0], [0], [1], [0, 0, 1, 1], [], []>} : vector<8x32xbf16>, vector<32x128xbf16>, vector<8x128xf32> -> vector<8x128xf32>
    %240 = arith.addf %237, %239 : vector<8x128xf32>
    %241 = vector.extract_strided_slice %240 {offsets = [0, 0], sizes = [8, 96], strides = [1, 1]} : vector<8x128xf32> to vector<8x96xf32>
    %cst_92 = arith.constant 5.000000e-01 : f32
    %242 = vector.broadcast %cst_92 : f32 to vector<8x96xf32>
    %243 = arith.mulf %242, %241 : vector<8x96xf32>
    %244 = math.tanh %243 : vector<8x96xf32>
    %cst_93 = arith.constant 5.000000e-01 : f32
    %245 = vector.broadcast %cst_93 : f32 to vector<8x96xf32>
    %246 = arith.mulf %245, %244 : vector<8x96xf32>
    %cst_94 = arith.constant 5.000000e-01 : f32
    %247 = vector.broadcast %cst_94 : f32 to vector<8x96xf32>
    %248 = arith.addf %246, %247 : vector<8x96xf32>
    %249 = vector.extract_strided_slice %248 {offsets = [0, 0], sizes = [8, 32], strides = [1, 1]} : vector<8x96xf32> to vector<8x32xf32>
    %250 = vector.extract_strided_slice %248 {offsets = [0, 32], sizes = [8, 32], strides = [1, 1]} : vector<8x96xf32> to vector<8x32xf32>
    %251 = vector.extract_strided_slice %248 {offsets = [0, 64], sizes = [8, 32], strides = [1, 1]} : vector<8x96xf32> to vector<8x32xf32>
    %252 = vector.extract_strided_slice %240 {offsets = [0, 96], sizes = [8, 32], strides = [1, 1]} : vector<8x128xf32> to vector<8x32xf32>
    %253 = math.tanh %252 : vector<8x32xf32>
    %254 = arith.mulf %250, %236 : vector<8x32xf32>
    %255 = arith.mulf %249, %253 : vector<8x32xf32>
    %256 = arith.addf %254, %255 : vector<8x32xf32>
    %257 = math.tanh %256 : vector<8x32xf32>
    %258 = arith.mulf %251, %257 : vector<8x32xf32>
    %c8_95 = arith.constant 8 : index
    %c0_96 = arith.constant 0 : index
    %259 = vector.load %arg7[%c8_95, %c0_96] : memref<64x128xf32, #tpu.memory_space<vmem>>, vector<8x128xf32>
    %260 = arith.truncf %258 : vector<8x32xf32> to vector<8x32xbf16>
    %cst_97 = arith.constant dense<0.000000e+00> : vector<8x128xf32>
    %261 = tpu.matmul %260, %234, %cst_97 {dimension_numbers = #tpu.dot_dimension_numbers<[1], [0], [0], [1], [0, 0, 1, 1], [], []>} : vector<8x32xbf16>, vector<32x128xbf16>, vector<8x128xf32> -> vector<8x128xf32>
    %262 = arith.addf %259, %261 : vector<8x128xf32>
    %263 = vector.extract_strided_slice %262 {offsets = [0, 0], sizes = [8, 96], strides = [1, 1]} : vector<8x128xf32> to vector<8x96xf32>
    %cst_98 = arith.constant 5.000000e-01 : f32
    %264 = vector.broadcast %cst_98 : f32 to vector<8x96xf32>
    %265 = arith.mulf %264, %263 : vector<8x96xf32>
    %266 = math.tanh %265 : vector<8x96xf32>
    %cst_99 = arith.constant 5.000000e-01 : f32
    %267 = vector.broadcast %cst_99 : f32 to vector<8x96xf32>
    %268 = arith.mulf %267, %266 : vector<8x96xf32>
    %cst_100 = arith.constant 5.000000e-01 : f32
    %269 = vector.broadcast %cst_100 : f32 to vector<8x96xf32>
    %270 = arith.addf %268, %269 : vector<8x96xf32>
    %271 = vector.extract_strided_slice %270 {offsets = [0, 0], sizes = [8, 32], strides = [1, 1]} : vector<8x96xf32> to vector<8x32xf32>
    %272 = vector.extract_strided_slice %270 {offsets = [0, 32], sizes = [8, 32], strides = [1, 1]} : vector<8x96xf32> to vector<8x32xf32>
    %273 = vector.extract_strided_slice %270 {offsets = [0, 64], sizes = [8, 32], strides = [1, 1]} : vector<8x96xf32> to vector<8x32xf32>
    %274 = vector.extract_strided_slice %262 {offsets = [0, 96], sizes = [8, 32], strides = [1, 1]} : vector<8x128xf32> to vector<8x32xf32>
    %275 = math.tanh %274 : vector<8x32xf32>
    %276 = arith.mulf %272, %256 : vector<8x32xf32>
    %277 = arith.mulf %271, %275 : vector<8x32xf32>
    %278 = arith.addf %276, %277 : vector<8x32xf32>
    %279 = math.tanh %278 : vector<8x32xf32>
    %280 = arith.mulf %273, %279 : vector<8x32xf32>
    %c16_101 = arith.constant 16 : index
    %c0_102 = arith.constant 0 : index
    %281 = vector.load %arg7[%c16_101, %c0_102] : memref<64x128xf32, #tpu.memory_space<vmem>>, vector<8x128xf32>
    %282 = arith.truncf %280 : vector<8x32xf32> to vector<8x32xbf16>
    %cst_103 = arith.constant dense<0.000000e+00> : vector<8x128xf32>
    %283 = tpu.matmul %282, %234, %cst_103 {dimension_numbers = #tpu.dot_dimension_numbers<[1], [0], [0], [1], [0, 0, 1, 1], [], []>} : vector<8x32xbf16>, vector<32x128xbf16>, vector<8x128xf32> -> vector<8x128xf32>
    %284 = arith.addf %281, %283 : vector<8x128xf32>
    %285 = vector.extract_strided_slice %284 {offsets = [0, 0], sizes = [8, 96], strides = [1, 1]} : vector<8x128xf32> to vector<8x96xf32>
    %cst_104 = arith.constant 5.000000e-01 : f32
    %286 = vector.broadcast %cst_104 : f32 to vector<8x96xf32>
    %287 = arith.mulf %286, %285 : vector<8x96xf32>
    %288 = math.tanh %287 : vector<8x96xf32>
    %cst_105 = arith.constant 5.000000e-01 : f32
    %289 = vector.broadcast %cst_105 : f32 to vector<8x96xf32>
    %290 = arith.mulf %289, %288 : vector<8x96xf32>
    %cst_106 = arith.constant 5.000000e-01 : f32
    %291 = vector.broadcast %cst_106 : f32 to vector<8x96xf32>
    %292 = arith.addf %290, %291 : vector<8x96xf32>
    %293 = vector.extract_strided_slice %292 {offsets = [0, 0], sizes = [8, 32], strides = [1, 1]} : vector<8x96xf32> to vector<8x32xf32>
    %294 = vector.extract_strided_slice %292 {offsets = [0, 32], sizes = [8, 32], strides = [1, 1]} : vector<8x96xf32> to vector<8x32xf32>
    %295 = vector.extract_strided_slice %292 {offsets = [0, 64], sizes = [8, 32], strides = [1, 1]} : vector<8x96xf32> to vector<8x32xf32>
    %296 = vector.extract_strided_slice %284 {offsets = [0, 96], sizes = [8, 32], strides = [1, 1]} : vector<8x128xf32> to vector<8x32xf32>
    %297 = math.tanh %296 : vector<8x32xf32>
    %298 = arith.mulf %294, %278 : vector<8x32xf32>
    %299 = arith.mulf %293, %297 : vector<8x32xf32>
    %300 = arith.addf %298, %299 : vector<8x32xf32>
    %301 = math.tanh %300 : vector<8x32xf32>
    %302 = arith.mulf %295, %301 : vector<8x32xf32>
    %c24_107 = arith.constant 24 : index
    %c0_108 = arith.constant 0 : index
    %303 = vector.load %arg7[%c24_107, %c0_108] : memref<64x128xf32, #tpu.memory_space<vmem>>, vector<8x128xf32>
    %304 = arith.truncf %302 : vector<8x32xf32> to vector<8x32xbf16>
    %cst_109 = arith.constant dense<0.000000e+00> : vector<8x128xf32>
    %305 = tpu.matmul %304, %234, %cst_109 {dimension_numbers = #tpu.dot_dimension_numbers<[1], [0], [0], [1], [0, 0, 1, 1], [], []>} : vector<8x32xbf16>, vector<32x128xbf16>, vector<8x128xf32> -> vector<8x128xf32>
    %306 = arith.addf %303, %305 : vector<8x128xf32>
    %307 = vector.extract_strided_slice %306 {offsets = [0, 0], sizes = [8, 96], strides = [1, 1]} : vector<8x128xf32> to vector<8x96xf32>
    %cst_110 = arith.constant 5.000000e-01 : f32
    %308 = vector.broadcast %cst_110 : f32 to vector<8x96xf32>
    %309 = arith.mulf %308, %307 : vector<8x96xf32>
    %310 = math.tanh %309 : vector<8x96xf32>
    %cst_111 = arith.constant 5.000000e-01 : f32
    %311 = vector.broadcast %cst_111 : f32 to vector<8x96xf32>
    %312 = arith.mulf %311, %310 : vector<8x96xf32>
    %cst_112 = arith.constant 5.000000e-01 : f32
    %313 = vector.broadcast %cst_112 : f32 to vector<8x96xf32>
    %314 = arith.addf %312, %313 : vector<8x96xf32>
    %315 = vector.extract_strided_slice %314 {offsets = [0, 0], sizes = [8, 32], strides = [1, 1]} : vector<8x96xf32> to vector<8x32xf32>
    %316 = vector.extract_strided_slice %314 {offsets = [0, 32], sizes = [8, 32], strides = [1, 1]} : vector<8x96xf32> to vector<8x32xf32>
    %317 = vector.extract_strided_slice %314 {offsets = [0, 64], sizes = [8, 32], strides = [1, 1]} : vector<8x96xf32> to vector<8x32xf32>
    %318 = vector.extract_strided_slice %306 {offsets = [0, 96], sizes = [8, 32], strides = [1, 1]} : vector<8x128xf32> to vector<8x32xf32>
    %319 = math.tanh %318 : vector<8x32xf32>
    %320 = arith.mulf %316, %300 : vector<8x32xf32>
    %321 = arith.mulf %315, %319 : vector<8x32xf32>
    %322 = arith.addf %320, %321 : vector<8x32xf32>
    %323 = math.tanh %322 : vector<8x32xf32>
    %324 = arith.mulf %317, %323 : vector<8x32xf32>
    %c32_113 = arith.constant 32 : index
    %c0_114 = arith.constant 0 : index
    %325 = vector.load %arg7[%c32_113, %c0_114] : memref<64x128xf32, #tpu.memory_space<vmem>>, vector<8x128xf32>
    %326 = arith.truncf %324 : vector<8x32xf32> to vector<8x32xbf16>
    %cst_115 = arith.constant dense<0.000000e+00> : vector<8x128xf32>
    %327 = tpu.matmul %326, %234, %cst_115 {dimension_numbers = #tpu.dot_dimension_numbers<[1], [0], [0], [1], [0, 0, 1, 1], [], []>} : vector<8x32xbf16>, vector<32x128xbf16>, vector<8x128xf32> -> vector<8x128xf32>
    %328 = arith.addf %325, %327 : vector<8x128xf32>
    %329 = vector.extract_strided_slice %328 {offsets = [0, 0], sizes = [8, 96], strides = [1, 1]} : vector<8x128xf32> to vector<8x96xf32>
    %cst_116 = arith.constant 5.000000e-01 : f32
    %330 = vector.broadcast %cst_116 : f32 to vector<8x96xf32>
    %331 = arith.mulf %330, %329 : vector<8x96xf32>
    %332 = math.tanh %331 : vector<8x96xf32>
    %cst_117 = arith.constant 5.000000e-01 : f32
    %333 = vector.broadcast %cst_117 : f32 to vector<8x96xf32>
    %334 = arith.mulf %333, %332 : vector<8x96xf32>
    %cst_118 = arith.constant 5.000000e-01 : f32
    %335 = vector.broadcast %cst_118 : f32 to vector<8x96xf32>
    %336 = arith.addf %334, %335 : vector<8x96xf32>
    %337 = vector.extract_strided_slice %336 {offsets = [0, 0], sizes = [8, 32], strides = [1, 1]} : vector<8x96xf32> to vector<8x32xf32>
    %338 = vector.extract_strided_slice %336 {offsets = [0, 32], sizes = [8, 32], strides = [1, 1]} : vector<8x96xf32> to vector<8x32xf32>
    %339 = vector.extract_strided_slice %336 {offsets = [0, 64], sizes = [8, 32], strides = [1, 1]} : vector<8x96xf32> to vector<8x32xf32>
    %340 = vector.extract_strided_slice %328 {offsets = [0, 96], sizes = [8, 32], strides = [1, 1]} : vector<8x128xf32> to vector<8x32xf32>
    %341 = math.tanh %340 : vector<8x32xf32>
    %342 = arith.mulf %338, %322 : vector<8x32xf32>
    %343 = arith.mulf %337, %341 : vector<8x32xf32>
    %344 = arith.addf %342, %343 : vector<8x32xf32>
    %345 = math.tanh %344 : vector<8x32xf32>
    %346 = arith.mulf %339, %345 : vector<8x32xf32>
    %c40_119 = arith.constant 40 : index
    %c0_120 = arith.constant 0 : index
    %347 = vector.load %arg7[%c40_119, %c0_120] : memref<64x128xf32, #tpu.memory_space<vmem>>, vector<8x128xf32>
    %348 = arith.truncf %346 : vector<8x32xf32> to vector<8x32xbf16>
    %cst_121 = arith.constant dense<0.000000e+00> : vector<8x128xf32>
    %349 = tpu.matmul %348, %234, %cst_121 {dimension_numbers = #tpu.dot_dimension_numbers<[1], [0], [0], [1], [0, 0, 1, 1], [], []>} : vector<8x32xbf16>, vector<32x128xbf16>, vector<8x128xf32> -> vector<8x128xf32>
    %350 = arith.addf %347, %349 : vector<8x128xf32>
    %351 = vector.extract_strided_slice %350 {offsets = [0, 0], sizes = [8, 96], strides = [1, 1]} : vector<8x128xf32> to vector<8x96xf32>
    %cst_122 = arith.constant 5.000000e-01 : f32
    %352 = vector.broadcast %cst_122 : f32 to vector<8x96xf32>
    %353 = arith.mulf %352, %351 : vector<8x96xf32>
    %354 = math.tanh %353 : vector<8x96xf32>
    %cst_123 = arith.constant 5.000000e-01 : f32
    %355 = vector.broadcast %cst_123 : f32 to vector<8x96xf32>
    %356 = arith.mulf %355, %354 : vector<8x96xf32>
    %cst_124 = arith.constant 5.000000e-01 : f32
    %357 = vector.broadcast %cst_124 : f32 to vector<8x96xf32>
    %358 = arith.addf %356, %357 : vector<8x96xf32>
    %359 = vector.extract_strided_slice %358 {offsets = [0, 0], sizes = [8, 32], strides = [1, 1]} : vector<8x96xf32> to vector<8x32xf32>
    %360 = vector.extract_strided_slice %358 {offsets = [0, 32], sizes = [8, 32], strides = [1, 1]} : vector<8x96xf32> to vector<8x32xf32>
    %361 = vector.extract_strided_slice %358 {offsets = [0, 64], sizes = [8, 32], strides = [1, 1]} : vector<8x96xf32> to vector<8x32xf32>
    %362 = vector.extract_strided_slice %350 {offsets = [0, 96], sizes = [8, 32], strides = [1, 1]} : vector<8x128xf32> to vector<8x32xf32>
    %363 = math.tanh %362 : vector<8x32xf32>
    %364 = arith.mulf %360, %344 : vector<8x32xf32>
    %365 = arith.mulf %359, %363 : vector<8x32xf32>
    %366 = arith.addf %364, %365 : vector<8x32xf32>
    %367 = math.tanh %366 : vector<8x32xf32>
    %368 = arith.mulf %361, %367 : vector<8x32xf32>
    %c48_125 = arith.constant 48 : index
    %c0_126 = arith.constant 0 : index
    %369 = vector.load %arg7[%c48_125, %c0_126] : memref<64x128xf32, #tpu.memory_space<vmem>>, vector<8x128xf32>
    %370 = arith.truncf %368 : vector<8x32xf32> to vector<8x32xbf16>
    %cst_127 = arith.constant dense<0.000000e+00> : vector<8x128xf32>
    %371 = tpu.matmul %370, %234, %cst_127 {dimension_numbers = #tpu.dot_dimension_numbers<[1], [0], [0], [1], [0, 0, 1, 1], [], []>} : vector<8x32xbf16>, vector<32x128xbf16>, vector<8x128xf32> -> vector<8x128xf32>
    %372 = arith.addf %369, %371 : vector<8x128xf32>
    %373 = vector.extract_strided_slice %372 {offsets = [0, 0], sizes = [8, 96], strides = [1, 1]} : vector<8x128xf32> to vector<8x96xf32>
    %cst_128 = arith.constant 5.000000e-01 : f32
    %374 = vector.broadcast %cst_128 : f32 to vector<8x96xf32>
    %375 = arith.mulf %374, %373 : vector<8x96xf32>
    %376 = math.tanh %375 : vector<8x96xf32>
    %cst_129 = arith.constant 5.000000e-01 : f32
    %377 = vector.broadcast %cst_129 : f32 to vector<8x96xf32>
    %378 = arith.mulf %377, %376 : vector<8x96xf32>
    %cst_130 = arith.constant 5.000000e-01 : f32
    %379 = vector.broadcast %cst_130 : f32 to vector<8x96xf32>
    %380 = arith.addf %378, %379 : vector<8x96xf32>
    %381 = vector.extract_strided_slice %380 {offsets = [0, 0], sizes = [8, 32], strides = [1, 1]} : vector<8x96xf32> to vector<8x32xf32>
    %382 = vector.extract_strided_slice %380 {offsets = [0, 32], sizes = [8, 32], strides = [1, 1]} : vector<8x96xf32> to vector<8x32xf32>
    %383 = vector.extract_strided_slice %380 {offsets = [0, 64], sizes = [8, 32], strides = [1, 1]} : vector<8x96xf32> to vector<8x32xf32>
    %384 = vector.extract_strided_slice %372 {offsets = [0, 96], sizes = [8, 32], strides = [1, 1]} : vector<8x128xf32> to vector<8x32xf32>
    %385 = math.tanh %384 : vector<8x32xf32>
    %386 = arith.mulf %382, %366 : vector<8x32xf32>
    %387 = arith.mulf %381, %385 : vector<8x32xf32>
    %388 = arith.addf %386, %387 : vector<8x32xf32>
    %389 = math.tanh %388 : vector<8x32xf32>
    %390 = arith.mulf %383, %389 : vector<8x32xf32>
    %c56_131 = arith.constant 56 : index
    %c0_132 = arith.constant 0 : index
    %391 = vector.load %arg7[%c56_131, %c0_132] : memref<64x128xf32, #tpu.memory_space<vmem>>, vector<8x128xf32>
    %392 = arith.truncf %390 : vector<8x32xf32> to vector<8x32xbf16>
    %cst_133 = arith.constant dense<0.000000e+00> : vector<8x128xf32>
    %393 = tpu.matmul %392, %234, %cst_133 {dimension_numbers = #tpu.dot_dimension_numbers<[1], [0], [0], [1], [0, 0, 1, 1], [], []>} : vector<8x32xbf16>, vector<32x128xbf16>, vector<8x128xf32> -> vector<8x128xf32>
    %394 = arith.addf %391, %393 : vector<8x128xf32>
    %395 = vector.extract_strided_slice %394 {offsets = [0, 0], sizes = [8, 96], strides = [1, 1]} : vector<8x128xf32> to vector<8x96xf32>
    %cst_134 = arith.constant 5.000000e-01 : f32
    %396 = vector.broadcast %cst_134 : f32 to vector<8x96xf32>
    %397 = arith.mulf %396, %395 : vector<8x96xf32>
    %398 = math.tanh %397 : vector<8x96xf32>
    %cst_135 = arith.constant 5.000000e-01 : f32
    %399 = vector.broadcast %cst_135 : f32 to vector<8x96xf32>
    %400 = arith.mulf %399, %398 : vector<8x96xf32>
    %cst_136 = arith.constant 5.000000e-01 : f32
    %401 = vector.broadcast %cst_136 : f32 to vector<8x96xf32>
    %402 = arith.addf %400, %401 : vector<8x96xf32>
    %403 = vector.extract_strided_slice %402 {offsets = [0, 0], sizes = [8, 32], strides = [1, 1]} : vector<8x96xf32> to vector<8x32xf32>
    %404 = vector.extract_strided_slice %402 {offsets = [0, 32], sizes = [8, 32], strides = [1, 1]} : vector<8x96xf32> to vector<8x32xf32>
    %405 = vector.extract_strided_slice %402 {offsets = [0, 64], sizes = [8, 32], strides = [1, 1]} : vector<8x96xf32> to vector<8x32xf32>
    %406 = vector.extract_strided_slice %394 {offsets = [0, 96], sizes = [8, 32], strides = [1, 1]} : vector<8x128xf32> to vector<8x32xf32>
    %407 = math.tanh %406 : vector<8x32xf32>
    %408 = arith.mulf %404, %388 : vector<8x32xf32>
    %409 = arith.mulf %403, %407 : vector<8x32xf32>
    %410 = arith.addf %408, %409 : vector<8x32xf32>
    %411 = math.tanh %410 : vector<8x32xf32>
    %412 = arith.mulf %405, %411 : vector<8x32xf32>
    %cst_137 = arith.constant 0.000000e+00 : f32
    %413 = vector.broadcast %cst_137 : f32 to vector<8x32xf32>
    %414 = arith.maximumf %412, %413 : vector<8x32xf32>
    %415 = arith.truncf %414 : vector<8x32xf32> to vector<8x32xbf16>
    %c0_138 = arith.constant 0 : index
    %c0_139 = arith.constant 0 : index
    %416 = vector.load %arg4[%c0_138, %c0_139] : memref<32x128xbf16, #tpu.memory_space<vmem>>, vector<32x128xbf16>
    %cst_140 = arith.constant dense<0.000000e+00> : vector<8x128xf32>
    %417 = tpu.matmul %415, %416, %cst_140 {dimension_numbers = #tpu.dot_dimension_numbers<[1], [0], [0], [1], [0, 0, 1, 1], [], []>} : vector<8x32xbf16>, vector<32x128xbf16>, vector<8x128xf32> -> vector<8x128xf32>
    %c0_141 = arith.constant 0 : index
    %c0_142 = arith.constant 0 : index
    %418 = vector.load %arg5[%c0_141, %c0_142] : memref<1x128xf32, #tpu.memory_space<vmem>>, vector<1x128xf32>
    %419 = vector.broadcast %418 : vector<1x128xf32> to vector<8x128xf32>
    %420 = arith.addf %417, %419 : vector<8x128xf32>
    %c0_143 = arith.constant 0 : index
    %c0_144 = arith.constant 0 : index
    %421 = vector.load %arg6[%c0_143, %c0_144] : memref<8x128xf32, #tpu.memory_space<vmem>>, vector<8x128xf32>
    tpu.vector_store %arg6[%c0_143, %c0_144], %420 {strides = array<i32>} : memref<8x128xf32, #tpu.memory_space<vmem>>, vector<8x128xf32>,
    return
  }
}

</mosaic_0001>

<llo_original>
// kernel: tpu_custom_call.1
$region0: #{tpu_custom_call.1}
  #allocation0 [shape = 'u32[]', space=smem, size = 0x4, offset = 0x4, fixed_abs, tag = 'smem constant byte address 0x4 - core index']
  #allocation1 [shape = 'u32[72,128]{1,0:T(1,128)}', space=vmem, size = 0x9000, scoped, tag = 'internal scratch']
  #allocation2 [shape = 'f32[64,128]{1,0:T(8,128)}', space=vmem, size = 0x8000, scoped, tag = 'scratch operand']
  %s0 = inlined_call_operand.vmem [shape: bf16[64,32], index: 0, kind: input, shape index: {}]
  %s1 = inlined_call_operand.vmem [shape: bf16[2,32,128], index: 1, kind: input, shape index: {}]
  %s2 = inlined_call_operand.hbm [shape: bf16[2,32,128], index: 2, kind: input, shape index: {}]
  %s3 = inlined_call_operand.vmem [shape: f32[2,1,128], index: 3, kind: input, shape index: {}]
  %s4 = inlined_call_operand.vmem [shape: bf16[32,128], index: 4, kind: input, shape index: {}]
  %s5 = inlined_call_operand.vmem [shape: f32[1,128], index: 5, kind: input, shape index: {}]
  %s6 = inlined_call_operand.hbm [shape: f32[8,128], index: 6, kind: output, shape index: {}]
  %s7 = sld [smem:[#allocation0]]
  $region38: #{tpu_custom_call.1} parent=0
    _
  %s9 = ssub.s32 1, %s7
  %s10 = scalar_select 0, %s9, %s7
  $region1: #{tpu_custom_call.1} parent=0
    #allocation3 [shape = 'u8[16384]{0}', space=vmem, size = 0x4000, scoped, tag = 'input window, operand 2, single buffered']
    #allocation4 [shape = 's32[1]{0}', space=sflag, size = 0x4, scoped, tag = 'scoped memory for tpu_custom_call.1']
    #allocation5 [shape = 's32[1]{0}', space=sflag, size = 0x4, scoped, tag = 'scoped memory for tpu_custom_call.1']
    #allocation6 [shape = 'u8[4096]{0}', space=vmem, size = 0x1000, scoped, tag = 'output window, operand 0, single buffered']
    %11 = vsyncpa [#allocation4], 0
    %12 = vsyncpa [#allocation5], 0
    // Predicated region
    $region2: #{tpu_custom_call.1} parent=1 // pred_check
      _
    $region3: #{tpu_custom_call.1} parent=1 // pred_check_branch
      %14 = sbr.rel (0) target = $region5
    $region4: #{tpu_custom_call.1} parent=1 // pred_region
      _
    $region5: #{tpu_custom_call.1} parent=1 // pred_fallthru
      _
    // Predicated region
    $region6: #{tpu_custom_call.1} parent=1 // pred_check
      _
    $region7: #{tpu_custom_call.1} parent=1 // pred_check_branch
      %16 = sbr.rel (0) target = $region9
    $region8: #{tpu_custom_call.1} parent=1 // pred_region
      _
    $region9: #{tpu_custom_call.1} parent=1 // pred_fallthru
      _
    // Predicated region
    $region10: #{tpu_custom_call.1} parent=1 // pred_check
      _
    $region11: #{tpu_custom_call.1} parent=1 // pred_check_branch
      %18 = sbr.rel (0) target = $region13
    $region12: #{tpu_custom_call.1} parent=1 // pred_region
      %20 = vsyncadd [#allocation4], 0
      %s21 = sshll.u32 %s2, 4
      %s22 = int_to_ptr.hbm [resolvable:$true] %s21
      %s23 = sshll.u32 [#allocation3], 4
      %s24 = int_to_ptr.vmem [resolvable:$true] %s23
      %29 = dma.hbm_to_vmem [thread:$0]  %s22, 512, %s24, [#allocation4], 64, 64, 4
    $region13: #{tpu_custom_call.1} parent=1 // pred_fallthru
      _
    // Predicated region
    $region14: #{tpu_custom_call.1} parent=1 // pred_check
      _
    $region15: #{tpu_custom_call.1} parent=1 // pred_check_branch
      %31 = sbr.rel (0) target = $region17
    $region16: #{tpu_custom_call.1} parent=1 // pred_region
      _
    $region17: #{tpu_custom_call.1} parent=1 // pred_fallthru
      _
    // Predicated region
    $region18: #{tpu_custom_call.1} parent=1 // pred_check
      _
    $region19: #{tpu_custom_call.1} parent=1 // pred_check_branch
      %33 = sbr.rel (0) target = $region21
    $region20: #{tpu_custom_call.1} parent=1 // pred_region
      _
    $region21: #{tpu_custom_call.1} parent=1 // pred_fallthru
      _
    // Predicated region
    $region22: #{tpu_custom_call.1} parent=1 // pred_check
      _
    $region23: #{tpu_custom_call.1} parent=1 // pred_check_branch
      %35 = sbr.rel (0) target = $region25
    $region24: #{tpu_custom_call.1} parent=1 // pred_region
      _
    $region25: #{tpu_custom_call.1} parent=1 // pred_fallthru
      _
    // Predicated region
    $region26: #{tpu_custom_call.1} parent=1 // pred_check
      _
    $region27: #{tpu_custom_call.1} parent=1 // pred_check_branch
      %37 = sbr.rel (0) target = $region29
    $region28: #{tpu_custom_call.1} parent=1 // pred_region
      %39 = dma.done [#allocation4], 512
    $region29: #{tpu_custom_call.1} parent=1 // pred_fallthru
      _
    %v41 = vld [vmem:[%s0] sm:$0xf]
    %v42 = vld [vmem:[%s0 + $0x4] sm:$0xf]
    %v43 = vld [vmem:[%s0 + $0x8] sm:$0xf]
    %v44 = vld [vmem:[%s0 + $0xc] sm:$0xf]
    %v45 = vld [vmem:[%s0 + $0x10] sm:$0xf]
    %v46 = vld [vmem:[%s0 + $0x14] sm:$0xf]
    %v47 = vld [vmem:[%s0 + $0x18] sm:$0xf]
    %v48 = vld [vmem:[%s0 + $0x1c] sm:$0xf]
    %v49 = vld [vmem:[%s1] sm:$0xf]
    %v50 = vld [vmem:[%s1 + $0x4] sm:$0xf]
    %v51 = vld [vmem:[%s1 + $0x8] sm:$0xf]
    %v52 = vld [vmem:[%s1 + $0xc] sm:$0xf]
    %v53 = vld [vmem:[%s3] sm:$0x1]
    %v55 = vperm.slane %v53, 0
    %v65 = vunpack.c.l.b16 %v41
    %v66 = vunpack.c.l.b16 %v42
    %v67 = vunpack.c.l.b16 %v43
    %v68 = vunpack.c.l.b16 %v44
    %v69 = vunpack.c.l.b16 %v45
    %v70 = vunpack.c.l.b16 %v46
    %v71 = vunpack.c.l.b16 %v47
    %v72 = vunpack.c.l.b16 %v48
    %v73 = vpack.c.b16 %v66, %v65
    %v74 = vpack.c.b16 %v68, %v67
    %v75 = vpack.c.b16 %v70, %v69
    %v76 = vpack.c.b16 %v72, %v71
    %v81 = vunpack.c.l.b16 %v49
    %v82 = vunpack.c.l.b16 %v50
    %v83 = vunpack.c.l.b16 %v51
    %v84 = vunpack.c.l.b16 %v52
    %v85 = vpack.c.b16 %v82, %v81
    %v86 = vpack.c.b16 %v84, %v83
    %vm89 = vcmask 261120
    %v91 = vsel %vm89, %v73, 0
    %v94 = vsel %vm89, %v74, 0
    %v97 = vsel %vm89, %v75, 0
    %v100 = vsel %vm89, %v76, 0
    %102 = vmatpush.bf16.msra.mxu0 0
    %103 = vmatpush.bf16.msra.mxu0 0
    %104 = vmatpush.bf16.msra.mxu0 0
    %105 = vmatpush.bf16.msra.mxu0 0
    %106 = vmatpush.bf16.msra.mxu0 0
    %107 = vmatpush.bf16.msra.mxu0 0
    %108 = vmatpush.bf16.msra.mxu0 %v86
    %109 = vmatpush.bf16.msra.mxu0 %v85
    %110 = vmatmul.bf16.gmra.mxu0 %v91
    %v111 = vpop.f32.mrf.mxu0
    %v112 = vadd.f32 %v55, %v111
    %v113 = vpop.f32.mrf.mxu0
    %v114 = vadd.f32 %v55, %v113
    %115 = vmatmul.bf16.gmra.mxu0 %v94
    %v116 = vpop.f32.mrf.mxu0
    %v117 = vadd.f32 %v55, %v116
    %v118 = vpop.f32.mrf.mxu0
    %v119 = vadd.f32 %v55, %v118
    %120 = vmatmul.bf16.gmra.mxu0 %v97
    %v121 = vpop.f32.mrf.mxu0
    %v122 = vadd.f32 %v55, %v121
    %v123 = vpop.f32.mrf.mxu0
    %v124 = vadd.f32 %v55, %v123
    %125 = vmatmul.bf16.gmra.mxu0 %v100
    %v126 = vpop.f32.mrf.mxu0
    %v127 = vadd.f32 %v55, %v126
    %v128 = vpop.f32.mrf.mxu0
    %v129 = vadd.f32 %v55, %v128
    %130 = vdwg.mxu0
    %131 = vst [vmem:[#allocation2] sm:$0xff] %v112
    %132 = vst [vmem:[#allocation2 + $0x8] sm:$0xff] %v114
    %133 = vst [vmem:[#allocation2 + $0x10] sm:$0xff] %v117
    %134 = vst [vmem:[#allocation2 + $0x18] sm:$0xff] %v119
    %135 = vst [vmem:[#allocation2 + $0x20] sm:$0xff] %v122
    %136 = vst [vmem:[#allocation2 + $0x28] sm:$0xff] %v124
    %137 = vst [vmem:[#allocation2 + $0x30] sm:$0xff] %v127
    %138 = vst [vmem:[#allocation2 + $0x38] sm:$0xff] %v129
    %v139 = vld [vmem:[#allocation3] sm:$0xf]
    %v140 = vld [vmem:[#allocation3 + $0x4] sm:$0xf]
    %v141 = vld [vmem:[#allocation3 + $0x8] sm:$0xf]
    %v142 = vld [vmem:[#allocation3 + $0xc] sm:$0xf]
    %s143 = scalar_lea.vmem %s1, 16
    %v144 = vld [vmem:[%s143] sm:$0xf]
    %v145 = vld [vmem:[%s143 + $0x4] sm:$0xf]
    %v146 = vld [vmem:[%s143 + $0x8] sm:$0xf]
    %v147 = vld [vmem:[%s143 + $0xc] sm:$0xf]
    %s148 = scalar_lea.vmem %s3, 1
    %v149 = vld [vmem:[%s148] sm:$0x1]
    %v150 = vld [vmem:[#allocation2] sm:$0xff]
    %v155 = vunpack.c.l.b16 %v139
    %v156 = vunpack.c.l.b16 %v140
    %v157 = vunpack.c.l.b16 %v141
    %v158 = vunpack.c.l.b16 %v142
    %v159 = vpack.c.b16 %v156, %v155
    %v160 = vpack.c.b16 %v158, %v157
    %v164 = vsel %vm89, 0, 0
    %166 = vmatpush.bf16.msra.mxu0 0
    %167 = vmatpush.bf16.msra.mxu0 0
    %168 = vmatpush.bf16.msra.mxu0 0
    %169 = vmatpush.bf16.msra.mxu0 0
    %170 = vmatpush.bf16.msra.mxu0 0
    %171 = vmatpush.bf16.msra.mxu0 0
    %172 = vmatpush.bf16.msra.mxu0 %v160
    %173 = vmatpush.bf16.msra.mxu0 %v159
    %174 = vmatmul.bf16.gmra.mxu0 %v164
    %v175 = vpop.f32.mrf.mxu0
    %v176 = vadd.f32 0.0, %v175
    %v177 = vpop.f32.mrf.mxu0
    %178 = vdwg.mxu0
    %v179 = vadd.f32 %v150, %v176
    %v180 = vmul.f32 %v179, 0.5
    %v181 = vtanh.pop %v180
    %v182 = vmul.f32 %v181, 0.5
    %v183 = vadd.f32 %v182, 0.5
    %v184 = vtanh.pop %v179
    %v185 = vmul.f32 %v183, 0.0
    %187 = vrot.lane.b32.xlu0 %v184, 32
    %v188 = vpop.permute.xlu0 %187
    %v190 = vmul.f32 %v183, %v188
    %192 = vrot.lane.b32.xlu0 %v190, 32
    %v193 = vpop.permute.xlu0 %192
    %v195 = vadd.f32 %v185, %v193
    %v196 = vtanh.pop %v195
    %198 = vrot.lane.b32.xlu0 %v196, 32
    %v199 = vpop.permute.xlu0 %198
    %v201 = vmul.f32 %v183, %v199
    %v202 = vpack.c.bf16 %v201, %v201
    %v204 = vperm.slane %v149, 0
    %207 = vrot.lane.b32.xlu0 %v202, 64
    %v208 = vpop.permute.xlu0 %207
    %v213 = vunpack.c.l.b16 %v144
    %v214 = vunpack.c.l.b16 %v145
    %v215 = vunpack.c.l.b16 %v146
    %v216 = vunpack.c.l.b16 %v147
    %v217 = vpack.c.b16 %v214, %v213
    %v218 = vpack.c.b16 %v216, %v215
    %v222 = vsel %vm89, %v208, 0
    %224 = vmatpush.bf16.msra.mxu0 0
    %225 = vmatpush.bf16.msra.mxu0 0
    %226 = vmatpush.bf16.msra.mxu0 0
    %227 = vmatpush.bf16.msra.mxu0 0
    %228 = vmatpush.bf16.msra.mxu0 0
    %229 = vmatpush.bf16.msra.mxu0 0
    %230 = vmatpush.bf16.msra.mxu0 %v218
    %231 = vmatpush.bf16.msra.mxu0 %v217
    %232 = vmatmul.bf16.gmra.mxu0 %v222
    %v233 = vpop.f32.mrf.mxu0
    %v234 = vadd.f32 %v204, %v233
    %v235 = vpop.f32.mrf.mxu0
    %236 = vdwg.mxu0
    %237 = vst [vmem:[#allocation2] sm:$0xff] %v234
    %v238 = vld [vmem:[#allocation2 + $0x8] sm:$0xff]
    %239 = vmatpush.bf16.msra.mxu0 0
    %240 = vmatpush.bf16.msra.mxu0 0
    %241 = vmatpush.bf16.msra.mxu0 0
    %242 = vmatpush.bf16.msra.mxu0 0
    %243 = vmatpush.bf16.msra.mxu0 0
    %244 = vmatpush.bf16.msra.mxu0 0
    %245 = vmatpush.bf16.msra.mxu0 %v160
    %246 = vmatpush.bf16.msra.mxu0 %v159
    %247 = vmatmul.bf16.gmra.mxu0 %v222
    %v248 = vpop.f32.mrf.mxu0
    %v249 = vadd.f32 0.0, %v248
    %v250 = vpop.f32.mrf.mxu0
    %251 = vdwg.mxu0
    %v252 = vadd.f32 %v238, %v249
    %v253 = vmul.f32 %v252, 0.5
    %v254 = vtanh.pop %v253
    %v255 = vmul.f32 %v254, 0.5
    %v256 = vadd.f32 %v255, 0.5
    %v257 = vtanh.pop %v252
    %v258 = vmul.f32 %v256, %v195
    %260 = vrot.lane.b32.xlu0 %v257, 32
    %v261 = vpop.permute.xlu0 %260
    %v263 = vmul.f32 %v256, %v261
    %265 = vrot.lane.b32.xlu0 %v263, 32
    %v266 = vpop.permute.xlu0 %265
    %v268 = vadd.f32 %v258, %v266
    %v269 = vtanh.pop %v268
    %271 = vrot.lane.b32.xlu0 %v269, 32
    %v272 = vpop.permute.xlu0 %271
    %v274 = vmul.f32 %v256, %v272
    %v275 = vpack.c.bf16 %v274, %v274
    %277 = vrot.lane.b32.xlu0 %v275, 64
    %v278 = vpop.permute.xlu0 %277
    %v280 = vsel %vm89, %v278, 0
    %282 = vmatpush.bf16.msra.mxu0 0
    %283 = vmatpush.bf16.msra.mxu0 0
    %284 = vmatpush.bf16.msra.mxu0 0
    %285 = vmatpush.bf16.msra.mxu0 0
    %286 = vmatpush.bf16.msra.mxu0 0
    %287 = vmatpush.bf16.msra.mxu0 0
    %288 = vmatpush.bf16.msra.mxu0 %v218
    %289 = vmatpush.bf16.msra.mxu0 %v217
    %290 = vmatmul.bf16.gmra.mxu0 %v280
    %v291 = vpop.f32.mrf.mxu0
    %v292 = vadd.f32 %v204, %v291
    %v293 = vpop.f32.mrf.mxu0
    %294 = vdwg.mxu0
    %295 = vst [vmem:[#allocation2 + $0x8] sm:$0xff] %v292
    %v296 = vld [vmem:[#allocation2 + $0x10] sm:$0xff]
    %297 = vmatpush.bf16.msra.mxu0 0
    %298 = vmatpush.bf16.msra.mxu0 0
    %299 = vmatpush.bf16.msra.mxu0 0
    %300 = vmatpush.bf16.msra.mxu0 0
    %301 = vmatpush.bf16.msra.mxu0 0
    %302 = vmatpush.bf16.msra.mxu0 0
    %303 = vmatpush.bf16.msra.mxu0 %v160
    %304 = vmatpush.bf16.msra.mxu0 %v159
    %305 = vmatmul.bf16.gmra.mxu0 %v280
    %v306 = vpop.f32.mrf.mxu0
    %v307 = vadd.f32 0.0, %v306
    %v308 = vpop.f32.mrf.mxu0
    %309 = vdwg.mxu0
    %v310 = vadd.f32 %v296, %v307
    %v311 = vmul.f32 %v310, 0.5
    %v312 = vtanh.pop %v311
    %v313 = vmul.f32 %v312, 0.5
    %v314 = vadd.f32 %v313, 0.5
    %v315 = vtanh.pop %v310
    %v316 = vmul.f32 %v314, %v268
    %318 = vrot.lane.b32.xlu0 %v315, 32
    %v319 = vpop.permute.xlu0 %318
    %v321 = vmul.f32 %v314, %v319
    %323 = vrot.lane.b32.xlu0 %v321, 32
    %v324 = vpop.permute.xlu0 %323
    %v326 = vadd.f32 %v316, %v324
    %v327 = vtanh.pop %v326
    %329 = vrot.lane.b32.xlu0 %v327, 32
    %v330 = vpop.permute.xlu0 %329
    %v332 = vmul.f32 %v314, %v330
    %v333 = vpack.c.bf16 %v332, %v332
    %335 = vrot.lane.b32.xlu0 %v333, 64
    %v336 = vpop.permute.xlu0 %335
    %v338 = vsel %vm89, %v336, 0
    %340 = vmatpush.bf16.msra.mxu0 0
    %341 = vmatpush.bf16.msra.mxu0 0
    %342 = vmatpush.bf16.msra.mxu0 0
    %343 = vmatpush.bf16.msra.mxu0 0
    %344 = vmatpush.bf16.msra.mxu0 0
    %345 = vmatpush.bf16.msra.mxu0 0
    %346 = vmatpush.bf16.msra.mxu0 %v218
    %347 = vmatpush.bf16.msra.mxu0 %v217
    %348 = vmatmul.bf16.gmra.mxu0 %v338
    %v349 = vpop.f32.mrf.mxu0
    %v350 = vadd.f32 %v204, %v349
    %v351 = vpop.f32.mrf.mxu0
    %352 = vdwg.mxu0
    %353 = vst [vmem:[#allocation2 + $0x10] sm:$0xff] %v350
    %v354 = vld [vmem:[#allocation2 + $0x18] sm:$0xff]
    %355 = vmatpush.bf16.msra.mxu0 0
    %356 = vmatpush.bf16.msra.mxu0 0
    %357 = vmatpush.bf16.msra.mxu0 0
    %358 = vmatpush.bf16.msra.mxu0 0
    %359 = vmatpush.bf16.msra.mxu0 0
    %360 = vmatpush.bf16.msra.mxu0 0
    %361 = vmatpush.bf16.msra.mxu0 %v160
    %362 = vmatpush.bf16.msra.mxu0 %v159
    %363 = vmatmul.bf16.gmra.mxu0 %v338
    %v364 = vpop.f32.mrf.mxu0
    %v365 = vadd.f32 0.0, %v364
    %v366 = vpop.f32.mrf.mxu0
    %367 = vdwg.mxu0
    %v368 = vadd.f32 %v354, %v365
    %v369 = vmul.f32 %v368, 0.5
    %v370 = vtanh.pop %v369
    %v371 = vmul.f32 %v370, 0.5
    %v372 = vadd.f32 %v371, 0.5
    %v373 = vtanh.pop %v368
    %v374 = vmul.f32 %v372, %v326
    %376 = vrot.lane.b32.xlu0 %v373, 32
    %v377 = vpop.permute.xlu0 %376
    %v379 = vmul.f32 %v372, %v377
    %381 = vrot.lane.b32.xlu0 %v379, 32
    %v382 = vpop.permute.xlu0 %381
    %v384 = vadd.f32 %v374, %v382
    %v385 = vtanh.pop %v384
    %387 = vrot.lane.b32.xlu0 %v385, 32
    %v388 = vpop.permute.xlu0 %387
    %v390 = vmul.f32 %v372, %v388
    %v391 = vpack.c.bf16 %v390, %v390
    %393 = vrot.lane.b32.xlu0 %v391, 64
    %v394 = vpop.permute.xlu0 %393
    %v396 = vsel %vm89, %v394, 0
    %398 = vmatpush.bf16.msra.mxu0 0
    %399 = vmatpush.bf16.msra.mxu0 0
    %400 = vmatpush.bf16.msra.mxu0 0
    %401 = vmatpush.bf16.msra.mxu0 0
    %402 = vmatpush.bf16.msra.mxu0 0
    %403 = vmatpush.bf16.msra.mxu0 0
    %404 = vmatpush.bf16.msra.mxu0 %v218
    %405 = vmatpush.bf16.msra.mxu0 %v217
    %406 = vmatmul.bf16.gmra.mxu0 %v396
    %v407 = vpop.f32.mrf.mxu0
    %v408 = vadd.f32 %v204, %v407
    %v409 = vpop.f32.mrf.mxu0
    %410 = vdwg.mxu0
    %411 = vst [vmem:[#allocation2 + $0x18] sm:$0xff] %v408
    %v412 = vld [vmem:[#allocation2 + $0x20] sm:$0xff]
    %413 = vmatpush.bf16.msra.mxu0 0
    %414 = vmatpush.bf16.msra.mxu0 0
    %415 = vmatpush.bf16.msra.mxu0 0
    %416 = vmatpush.bf16.msra.mxu0 0
    %417 = vmatpush.bf16.msra.mxu0 0
    %418 = vmatpush.bf16.msra.mxu0 0
    %419 = vmatpush.bf16.msra.mxu0 %v160
    %420 = vmatpush.bf16.msra.mxu0 %v159
    %421 = vmatmul.bf16.gmra.mxu0 %v396
    %v422 = vpop.f32.mrf.mxu0
    %v423 = vadd.f32 0.0, %v422
    %v424 = vpop.f32.mrf.mxu0
    %425 = vdwg.mxu0
    %v426 = vadd.f32 %v412, %v423
    %v427 = vmul.f32 %v426, 0.5
    %v428 = vtanh.pop %v427
    %v429 = vmul.f32 %v428, 0.5
    %v430 = vadd.f32 %v429, 0.5
    %v431 = vtanh.pop %v426
    %v432 = vmul.f32 %v430, %v384
    %434 = vrot.lane.b32.xlu0 %v431, 32
    %v435 = vpop.permute.xlu0 %434
    %v437 = vmul.f32 %v430, %v435
    %439 = vrot.lane.b32.xlu0 %v437, 32
    %v440 = vpop.permute.xlu0 %439
    %v442 = vadd.f32 %v432, %v440
    %v443 = vtanh.pop %v442
    %445 = vrot.lane.b32.xlu0 %v443, 32
    %v446 = vpop.permute.xlu0 %445
    %v448 = vmul.f32 %v430, %v446
    %v449 = vpack.c.bf16 %v448, %v448
    %451 = vrot.lane.b32.xlu0 %v449, 64
    %v452 = vpop.permute.xlu0 %451
    %v454 = vsel %vm89, %v452, 0
    %456 = vmatpush.bf16.msra.mxu0 0
    %457 = vmatpush.bf16.msra.mxu0 0
    %458 = vmatpush.bf16.msra.mxu0 0
    %459 = vmatpush.bf16.msra.mxu0 0
    %460 = vmatpush.bf16.msra.mxu0 0
    %461 = vmatpush.bf16.msra.mxu0 0
    %462 = vmatpush.bf16.msra.mxu0 %v218
    %463 = vmatpush.bf16.msra.mxu0 %v217
    %464 = vmatmul.bf16.gmra.mxu0 %v454
    %v465 = vpop.f32.mrf.mxu0
    %v466 = vadd.f32 %v204, %v465
    %v467 = vpop.f32.mrf.mxu0
    %468 = vdwg.mxu0
    %469 = vst [vmem:[#allocation2 + $0x20] sm:$0xff] %v466
    %v470 = vld [vmem:[#allocation2 + $0x28] sm:$0xff]
    %471 = vmatpush.bf16.msra.mxu0 0
    %472 = vmatpush.bf16.msra.mxu0 0
    %473 = vmatpush.bf16.msra.mxu0 0
    %474 = vmatpush.bf16.msra.mxu0 0
    %475 = vmatpush.bf16.msra.mxu0 0
    %476 = vmatpush.bf16.msra.mxu0 0
    %477 = vmatpush.bf16.msra.mxu0 %v160
    %478 = vmatpush.bf16.msra.mxu0 %v159
    %479 = vmatmul.bf16.gmra.mxu0 %v454
    %v480 = vpop.f32.mrf.mxu0
    %v481 = vadd.f32 0.0, %v480
    %v482 = vpop.f32.mrf.mxu0
    %483 = vdwg.mxu0
    %v484 = vadd.f32 %v470, %v481
    %v485 = vmul.f32 %v484, 0.5
    %v486 = vtanh.pop %v485
    %v487 = vmul.f32 %v486, 0.5
    %v488 = vadd.f32 %v487, 0.5
    %v489 = vtanh.pop %v484
    %v490 = vmul.f32 %v488, %v442
    %492 = vrot.lane.b32.xlu0 %v489, 32
    %v493 = vpop.permute.xlu0 %492
    %v495 = vmul.f32 %v488, %v493
    %497 = vrot.lane.b32.xlu0 %v495, 32
    %v498 = vpop.permute.xlu0 %497
    %v500 = vadd.f32 %v490, %v498
    %v501 = vtanh.pop %v500
    %503 = vrot.lane.b32.xlu0 %v501, 32
    %v504 = vpop.permute.xlu0 %503
    %v506 = vmul.f32 %v488, %v504
    %v507 = vpack.c.bf16 %v506, %v506
    %509 = vrot.lane.b32.xlu0 %v507, 64
    %v510 = vpop.permute.xlu0 %509
    %v512 = vsel %vm89, %v510, 0
    %514 = vmatpush.bf16.msra.mxu0 0
    %515 = vmatpush.bf16.msra.mxu0 0
    %516 = vmatpush.bf16.msra.mxu0 0
    %517 = vmatpush.bf16.msra.mxu0 0
    %518 = vmatpush.bf16.msra.mxu0 0
    %519 = vmatpush.bf16.msra.mxu0 0
    %520 = vmatpush.bf16.msra.mxu0 %v218
    %521 = vmatpush.bf16.msra.mxu0 %v217
    %522 = vmatmul.bf16.gmra.mxu0 %v512
    %v523 = vpop.f32.mrf.mxu0
    %v524 = vadd.f32 %v204, %v523
    %v525 = vpop.f32.mrf.mxu0
    %526 = vdwg.mxu0
    %527 = vst [vmem:[#allocation2 + $0x28] sm:$0xff] %v524
    %v528 = vld [vmem:[#allocation2 + $0x30] sm:$0xff]
    %529 = vmatpush.bf16.msra.mxu0 0
    %530 = vmatpush.bf16.msra.mxu0 0
    %531 = vmatpush.bf16.msra.mxu0 0
    %532 = vmatpush.bf16.msra.mxu0 0
    %533 = vmatpush.bf16.msra.mxu0 0
    %534 = vmatpush.bf16.msra.mxu0 0
    %535 = vmatpush.bf16.msra.mxu0 %v160
    %536 = vmatpush.bf16.msra.mxu0 %v159
    %537 = vmatmul.bf16.gmra.mxu0 %v512
    %v538 = vpop.f32.mrf.mxu0
    %v539 = vadd.f32 0.0, %v538
    %v540 = vpop.f32.mrf.mxu0
    %541 = vdwg.mxu0
    %v542 = vadd.f32 %v528, %v539
    %v543 = vmul.f32 %v542, 0.5
    %v544 = vtanh.pop %v543
    %v545 = vmul.f32 %v544, 0.5
    %v546 = vadd.f32 %v545, 0.5
    %v547 = vtanh.pop %v542
    %v548 = vmul.f32 %v546, %v500
    %550 = vrot.lane.b32.xlu0 %v547, 32
    %v551 = vpop.permute.xlu0 %550
    %v553 = vmul.f32 %v546, %v551
    %555 = vrot.lane.b32.xlu0 %v553, 32
    %v556 = vpop.permute.xlu0 %555
    %v558 = vadd.f32 %v548, %v556
    %v559 = vtanh.pop %v558
    %561 = vrot.lane.b32.xlu0 %v559, 32
    %v562 = vpop.permute.xlu0 %561
    %v564 = vmul.f32 %v546, %v562
    %v565 = vpack.c.bf16 %v564, %v564
    %567 = vrot.lane.b32.xlu0 %v565, 64
    %v568 = vpop.permute.xlu0 %567
    %v570 = vsel %vm89, %v568, 0
    %572 = vmatpush.bf16.msra.mxu0 0
    %573 = vmatpush.bf16.msra.mxu0 0
    %574 = vmatpush.bf16.msra.mxu0 0
    %575 = vmatpush.bf16.msra.mxu0 0
    %576 = vmatpush.bf16.msra.mxu0 0
    %577 = vmatpush.bf16.msra.mxu0 0
    %578 = vmatpush.bf16.msra.mxu0 %v218
    %579 = vmatpush.bf16.msra.mxu0 %v217
    %580 = vmatmul.bf16.gmra.mxu0 %v570
    %v581 = vpop.f32.mrf.mxu0
    %v582 = vadd.f32 %v204, %v581
    %v583 = vpop.f32.mrf.mxu0
    %584 = vdwg.mxu0
    %585 = vst [vmem:[#allocation2 + $0x30] sm:$0xff] %v582
    %v586 = vld [vmem:[#allocation2 + $0x38] sm:$0xff]
    %587 = vmatpush.bf16.msra.mxu0 0
    %588 = vmatpush.bf16.msra.mxu0 0
    %589 = vmatpush.bf16.msra.mxu0 0
    %590 = vmatpush.bf16.msra.mxu0 0
    %591 = vmatpush.bf16.msra.mxu0 0
    %592 = vmatpush.bf16.msra.mxu0 0
    %593 = vmatpush.bf16.msra.mxu0 %v160
    %594 = vmatpush.bf16.msra.mxu0 %v159
    %595 = vmatmul.bf16.gmra.mxu0 %v570
    %v596 = vpop.f32.mrf.mxu0
    %v597 = vadd.f32 0.0, %v596
    %v598 = vpop.f32.mrf.mxu0
    %599 = vdwg.mxu0
    %v600 = vadd.f32 %v586, %v597
    %v601 = vmul.f32 %v600, 0.5
    %v602 = vtanh.pop %v601
    %v603 = vmul.f32 %v602, 0.5
    %v604 = vadd.f32 %v603, 0.5
    %v605 = vtanh.pop %v600
    %v606 = vmul.f32 %v604, %v558
    %608 = vrot.lane.b32.xlu0 %v605, 32
    %v609 = vpop.permute.xlu0 %608
    %v611 = vmul.f32 %v604, %v609
    %613 = vrot.lane.b32.xlu0 %v611, 32
    %v614 = vpop.permute.xlu0 %613
    %v616 = vadd.f32 %v606, %v614
    %v617 = vtanh.pop %v616
    %619 = vrot.lane.b32.xlu0 %v617, 32
    %v620 = vpop.permute.xlu0 %619
    %v622 = vmul.f32 %v604, %v620
    %v623 = vpack.c.bf16 %v622, %v622
    %625 = vrot.lane.b32.xlu0 %v623, 64
    %v626 = vpop.permute.xlu0 %625
    %v628 = vsel %vm89, %v626, 0
    %630 = vmatpush.bf16.msra.mxu0 0
    %631 = vmatpush.bf16.msra.mxu0 0
    %632 = vmatpush.bf16.msra.mxu0 0
    %633 = vmatpush.bf16.msra.mxu0 0
    %634 = vmatpush.bf16.msra.mxu0 0
    %635 = vmatpush.bf16.msra.mxu0 0
    %636 = vmatpush.bf16.msra.mxu0 %v218
    %637 = vmatpush.bf16.msra.mxu0 %v217
    %638 = vmatmul.bf16.gmra.mxu0 %v628
    %v639 = vpop.f32.mrf.mxu0
    %v640 = vadd.f32 %v204, %v639
    %v641 = vpop.f32.mrf.mxu0
    %642 = vdwg.mxu0
    %643 = vst [vmem:[#allocation2 + $0x38] sm:$0xff] %v640
    %s644 = scalar_lea.vmem [#allocation3], 16
    %v645 = vld [vmem:[%s644] sm:$0xf]
    %v646 = vld [vmem:[%s644 + $0x4] sm:$0xf]
    %v647 = vld [vmem:[%s644 + $0x8] sm:$0xf]
    %v648 = vld [vmem:[%s644 + $0xc] sm:$0xf]
    %v649 = vld [vmem:[#allocation2] sm:$0xff]
    %v654 = vunpack.c.l.b16 %v645
    %v655 = vunpack.c.l.b16 %v646
    %v656 = vunpack.c.l.b16 %v647
    %v657 = vunpack.c.l.b16 %v648
    %v658 = vpack.c.b16 %v655, %v654
    %v659 = vpack.c.b16 %v657, %v656
    %662 = vmatpush.bf16.msra.mxu0 0
    %663 = vmatpush.bf16.msra.mxu0 0
    %664 = vmatpush.bf16.msra.mxu0 0
    %665 = vmatpush.bf16.msra.mxu0 0
    %666 = vmatpush.bf16.msra.mxu0 0
    %667 = vmatpush.bf16.msra.mxu0 0
    %668 = vmatpush.bf16.msra.mxu0 %v659
    %669 = vmatpush.bf16.msra.mxu0 %v658
    %670 = vmatmul.bf16.gmra.mxu0 %v164
    %v671 = vpop.f32.mrf.mxu0
    %v672 = vadd.f32 0.0, %v671
    %v673 = vpop.f32.mrf.mxu0
    %674 = vdwg.mxu0
    %v675 = vadd.f32 %v649, %v672
    %v676 = vmul.f32 %v675, 0.5
    %v677 = vtanh.pop %v676
    %v678 = vmul.f32 %v677, 0.5
    %v679 = vadd.f32 %v678, 0.5
    %v680 = vtanh.pop %v675
    %v681 = vmul.f32 %v679, 0.0
    %683 = vrot.lane.b32.xlu0 %v680, 32
    %v684 = vpop.permute.xlu0 %683
    %v686 = vmul.f32 %v679, %v684
    %688 = vrot.lane.b32.xlu0 %v686, 32
    %v689 = vpop.permute.xlu0 %688
    %v691 = vadd.f32 %v681, %v689
    %v692 = vtanh.pop %v691
    %694 = vrot.lane.b32.xlu0 %v692, 32
    %v695 = vpop.permute.xlu0 %694
    %v697 = vmul.f32 %v679, %v695
    %v698 = vld [vmem:[#allocation2 + $0x8] sm:$0xff]
    %v699 = vpack.c.bf16 %v697, %v697
    %701 = vrot.lane.b32.xlu0 %v699, 64
    %v702 = vpop.permute.xlu0 %701
    %v704 = vsel %vm89, %v702, 0
    %706 = vmatpush.bf16.msra.mxu0 0
    %707 = vmatpush.bf16.msra.mxu0 0
    %708 = vmatpush.bf16.msra.mxu0 0
    %709 = vmatpush.bf16.msra.mxu0 0
    %710 = vmatpush.bf16.msra.mxu0 0
    %711 = vmatpush.bf16.msra.mxu0 0
    %712 = vmatpush.bf16.msra.mxu0 %v659
    %713 = vmatpush.bf16.msra.mxu0 %v658
    %714 = vmatmul.bf16.gmra.mxu0 %v704
    %v715 = vpop.f32.mrf.mxu0
    %v716 = vadd.f32 0.0, %v715
    %v717 = vpop.f32.mrf.mxu0
    %718 = vdwg.mxu0
    %v719 = vadd.f32 %v698, %v716
    %v720 = vmul.f32 %v719, 0.5
    %v721 = vtanh.pop %v720
    %v722 = vmul.f32 %v721, 0.5
    %v723 = vadd.f32 %v722, 0.5
    %v724 = vtanh.pop %v719
    %v725 = vmul.f32 %v723, %v691
    %727 = vrot.lane.b32.xlu0 %v724, 32
    %v728 = vpop.permute.xlu0 %727
    %v730 = vmul.f32 %v723, %v728
    %732 = vrot.lane.b32.xlu0 %v730, 32
    %v733 = vpop.permute.xlu0 %732
    %v735 = vadd.f32 %v725, %v733
    %v736 = vtanh.pop %v735
    %738 = vrot.lane.b32.xlu0 %v736, 32
    %v739 = vpop.permute.xlu0 %738
    %v741 = vmul.f32 %v723, %v739
    %v742 = vld [vmem:[#allocation2 + $0x10] sm:$0xff]
    %v743 = vpack.c.bf16 %v741, %v741
    %745 = vrot.lane.b32.xlu0 %v743, 64
    %v746 = vpop.permute.xlu0 %745
    %v748 = vsel %vm89, %v746, 0
    %750 = vmatpush.bf16.msra.mxu0 0
    %751 = vmatpush.bf16.msra.mxu0 0
    %752 = vmatpush.bf16.msra.mxu0 0
    %753 = vmatpush.bf16.msra.mxu0 0
    %754 = vmatpush.bf16.msra.mxu0 0
    %755 = vmatpush.bf16.msra.mxu0 0
    %756 = vmatpush.bf16.msra.mxu0 %v659
    %757 = vmatpush.bf16.msra.mxu0 %v658
    %758 = vmatmul.bf16.gmra.mxu0 %v748
    %v759 = vpop.f32.mrf.mxu0
    %v760 = vadd.f32 0.0, %v759
    %v761 = vpop.f32.mrf.mxu0
    %762 = vdwg.mxu0
    %v763 = vadd.f32 %v742, %v760
    %v764 = vmul.f32 %v763, 0.5
    %v765 = vtanh.pop %v764
    %v766 = vmul.f32 %v765, 0.5
    %v767 = vadd.f32 %v766, 0.5
    %v768 = vtanh.pop %v763
    %v769 = vmul.f32 %v767, %v735
    %771 = vrot.lane.b32.xlu0 %v768, 32
    %v772 = vpop.permute.xlu0 %771
    %v774 = vmul.f32 %v767, %v772
    %776 = vrot.lane.b32.xlu0 %v774, 32
    %v777 = vpop.permute.xlu0 %776
    %v779 = vadd.f32 %v769, %v777
    %v780 = vtanh.pop %v779
    %782 = vrot.lane.b32.xlu0 %v780, 32
    %v783 = vpop.permute.xlu0 %782
    %v785 = vmul.f32 %v767, %v783
    %v786 = vld [vmem:[#allocation2 + $0x18] sm:$0xff]
    %v787 = vpack.c.bf16 %v785, %v785
    %789 = vrot.lane.b32.xlu0 %v787, 64
    %v790 = vpop.permute.xlu0 %789
    %v792 = vsel %vm89, %v790, 0
    %794 = vmatpush.bf16.msra.mxu0 0
    %795 = vmatpush.bf16.msra.mxu0 0
    %796 = vmatpush.bf16.msra.mxu0 0
    %797 = vmatpush.bf16.msra.mxu0 0
    %798 = vmatpush.bf16.msra.mxu0 0
    %799 = vmatpush.bf16.msra.mxu0 0
    %800 = vmatpush.bf16.msra.mxu0 %v659
    %801 = vmatpush.bf16.msra.mxu0 %v658
    %802 = vmatmul.bf16.gmra.mxu0 %v792
    %v803 = vpop.f32.mrf.mxu0
    %v804 = vadd.f32 0.0, %v803
    %v805 = vpop.f32.mrf.mxu0
    %806 = vdwg.mxu0
    %v807 = vadd.f32 %v786, %v804
    %v808 = vmul.f32 %v807, 0.5
    %v809 = vtanh.pop %v808
    %v810 = vmul.f32 %v809, 0.5
    %v811 = vadd.f32 %v810, 0.5
    %v812 = vtanh.pop %v807
    %v813 = vmul.f32 %v811, %v779
    %815 = vrot.lane.b32.xlu0 %v812, 32
    %v816 = vpop.permute.xlu0 %815
    %v818 = vmul.f32 %v811, %v816
    %820 = vrot.lane.b32.xlu0 %v818, 32
    %v821 = vpop.permute.xlu0 %820
    %v823 = vadd.f32 %v813, %v821
    %v824 = vtanh.pop %v823
    %826 = vrot.lane.b32.xlu0 %v824, 32
    %v827 = vpop.permute.xlu0 %826
    %v829 = vmul.f32 %v811, %v827
    %v830 = vld [vmem:[#allocation2 + $0x20] sm:$0xff]
    %v831 = vpack.c.bf16 %v829, %v829
    %833 = vrot.lane.b32.xlu0 %v831, 64
    %v834 = vpop.permute.xlu0 %833
    %v836 = vsel %vm89, %v834, 0
    %838 = vmatpush.bf16.msra.mxu0 0
    %839 = vmatpush.bf16.msra.mxu0 0
    %840 = vmatpush.bf16.msra.mxu0 0
    %841 = vmatpush.bf16.msra.mxu0 0
    %842 = vmatpush.bf16.msra.mxu0 0
    %843 = vmatpush.bf16.msra.mxu0 0
    %844 = vmatpush.bf16.msra.mxu0 %v659
    %845 = vmatpush.bf16.msra.mxu0 %v658
    %846 = vmatmul.bf16.gmra.mxu0 %v836
    %v847 = vpop.f32.mrf.mxu0
    %v848 = vadd.f32 0.0, %v847
    %v849 = vpop.f32.mrf.mxu0
    %850 = vdwg.mxu0
    %v851 = vadd.f32 %v830, %v848
    %v852 = vmul.f32 %v851, 0.5
    %v853 = vtanh.pop %v852
    %v854 = vmul.f32 %v853, 0.5
    %v855 = vadd.f32 %v854, 0.5
    %v856 = vtanh.pop %v851
    %v857 = vmul.f32 %v855, %v823
    %859 = vrot.lane.b32.xlu0 %v856, 32
    %v860 = vpop.permute.xlu0 %859
    %v862 = vmul.f32 %v855, %v860
    %864 = vrot.lane.b32.xlu0 %v862, 32
    %v865 = vpop.permute.xlu0 %864
    %v867 = vadd.f32 %v857, %v865
    %v868 = vtanh.pop %v867
    %870 = vrot.lane.b32.xlu0 %v868, 32
    %v871 = vpop.permute.xlu0 %870
    %v873 = vmul.f32 %v855, %v871
    %v874 = vld [vmem:[#allocation2 + $0x28] sm:$0xff]
    %v875 = vpack.c.bf16 %v873, %v873
    %877 = vrot.lane.b32.xlu0 %v875, 64
    %v878 = vpop.permute.xlu0 %877
    %v880 = vsel %vm89, %v878, 0
    %882 = vmatpush.bf16.msra.mxu0 0
    %883 = vmatpush.bf16.msra.mxu0 0
    %884 = vmatpush.bf16.msra.mxu0 0
    %885 = vmatpush.bf16.msra.mxu0 0
    %886 = vmatpush.bf16.msra.mxu0 0
    %887 = vmatpush.bf16.msra.mxu0 0
    %888 = vmatpush.bf16.msra.mxu0 %v659
    %889 = vmatpush.bf16.msra.mxu0 %v658
    %890 = vmatmul.bf16.gmra.mxu0 %v880
    %v891 = vpop.f32.mrf.mxu0
    %v892 = vadd.f32 0.0, %v891
    %v893 = vpop.f32.mrf.mxu0
    %894 = vdwg.mxu0
    %v895 = vadd.f32 %v874, %v892
    %v896 = vmul.f32 %v895, 0.5
    %v897 = vtanh.pop %v896
    %v898 = vmul.f32 %v897, 0.5
    %v899 = vadd.f32 %v898, 0.5
    %v900 = vtanh.pop %v895
    %v901 = vmul.f32 %v899, %v867
    %903 = vrot.lane.b32.xlu0 %v900, 32
    %v904 = vpop.permute.xlu0 %903
    %v906 = vmul.f32 %v899, %v904
    %908 = vrot.lane.b32.xlu0 %v906, 32
    %v909 = vpop.permute.xlu0 %908
    %v911 = vadd.f32 %v901, %v909
    %v912 = vtanh.pop %v911
    %914 = vrot.lane.b32.xlu0 %v912, 32
    %v915 = vpop.permute.xlu0 %914
    %v917 = vmul.f32 %v899, %v915
    %v918 = vld [vmem:[#allocation2 + $0x30] sm:$0xff]
    %v919 = vpack.c.bf16 %v917, %v917
    %921 = vrot.lane.b32.xlu0 %v919, 64
    %v922 = vpop.permute.xlu0 %921
    %v924 = vsel %vm89, %v922, 0
    %926 = vmatpush.bf16.msra.mxu0 0
    %927 = vmatpush.bf16.msra.mxu0 0
    %928 = vmatpush.bf16.msra.mxu0 0
    %929 = vmatpush.bf16.msra.mxu0 0
    %930 = vmatpush.bf16.msra.mxu0 0
    %931 = vmatpush.bf16.msra.mxu0 0
    %932 = vmatpush.bf16.msra.mxu0 %v659
    %933 = vmatpush.bf16.msra.mxu0 %v658
    %934 = vmatmul.bf16.gmra.mxu0 %v924
    %v935 = vpop.f32.mrf.mxu0
    %v936 = vadd.f32 0.0, %v935
    %v937 = vpop.f32.mrf.mxu0
    %938 = vdwg.mxu0
    %v939 = vadd.f32 %v918, %v936
    %v940 = vmul.f32 %v939, 0.5
    %v941 = vtanh.pop %v940
    %v942 = vmul.f32 %v941, 0.5
    %v943 = vadd.f32 %v942, 0.5
    %v944 = vtanh.pop %v939
    %v945 = vmul.f32 %v943, %v911
    %947 = vrot.lane.b32.xlu0 %v944, 32
    %v948 = vpop.permute.xlu0 %947
    %v950 = vmul.f32 %v943, %v948
    %952 = vrot.lane.b32.xlu0 %v950, 32
    %v953 = vpop.permute.xlu0 %952
    %v955 = vadd.f32 %v945, %v953
    %v956 = vtanh.pop %v955
    %958 = vrot.lane.b32.xlu0 %v956, 32
    %v959 = vpop.permute.xlu0 %958
    %v961 = vmul.f32 %v943, %v959
    %v962 = vld [vmem:[#allocation2 + $0x38] sm:$0xff]
    %v963 = vpack.c.bf16 %v961, %v961
    %965 = vrot.lane.b32.xlu0 %v963, 64
    %v966 = vpop.permute.xlu0 %965
    %v968 = vsel %vm89, %v966, 0
    %970 = vmatpush.bf16.msra.mxu0 0
    %971 = vmatpush.bf16.msra.mxu0 0
    %972 = vmatpush.bf16.msra.mxu0 0
    %973 = vmatpush.bf16.msra.mxu0 0
    %974 = vmatpush.bf16.msra.mxu0 0
    %975 = vmatpush.bf16.msra.mxu0 0
    %976 = vmatpush.bf16.msra.mxu0 %v659
    %977 = vmatpush.bf16.msra.mxu0 %v658
    %978 = vmatmul.bf16.gmra.mxu0 %v968
    %v979 = vpop.f32.mrf.mxu0
    %v980 = vadd.f32 0.0, %v979
    %v981 = vpop.f32.mrf.mxu0
    %982 = vdwg.mxu0
    %v983 = vadd.f32 %v962, %v980
    %v984 = vmul.f32 %v983, 0.5
    %v985 = vtanh.pop %v984
    %v986 = vmul.f32 %v985, 0.5
    %v987 = vadd.f32 %v986, 0.5
    %v988 = vtanh.pop %v983
    %v989 = vmul.f32 %v987, %v955
    %991 = vrot.lane.b32.xlu0 %v988, 32
    %v992 = vpop.permute.xlu0 %991
    %v994 = vmul.f32 %v987, %v992
    %996 = vrot.lane.b32.xlu0 %v994, 32
    %v997 = vpop.permute.xlu0 %996
    %v999 = vadd.f32 %v989, %v997
    %v1000 = vtanh.pop %v999
    %1002 = vrot.lane.b32.xlu0 %v1000, 32
    %v1003 = vpop.permute.xlu0 %1002
    %v1005 = vmul.f32 %v987, %v1003
    %v1006 = vmax.f32 %v1005, 0.0
    %v1007 = vpack.c.bf16 %v1006, %v1006
    %v1008 = vld [vmem:[%s4] sm:$0xf]
    %v1009 = vld [vmem:[%s4 + $0x4] sm:$0xf]
    %v1010 = vld [vmem:[%s4 + $0x8] sm:$0xf]
    %v1011 = vld [vmem:[%s4 + $0xc] sm:$0xf]
    %v1012 = vld [vmem:[%s5] sm:$0x1]
    %v1014 = vperm.slane %v1012, 0
    %1017 = vrot.lane.b32.xlu0 %v1007, 64
    %v1018 = vpop.permute.xlu0 %1017
    %v1023 = vunpack.c.l.b16 %v1008
    %v1024 = vunpack.c.l.b16 %v1009
    %v1025 = vunpack.c.l.b16 %v1010
    %v1026 = vunpack.c.l.b16 %v1011
    %v1027 = vpack.c.b16 %v1024, %v1023
    %v1028 = vpack.c.b16 %v1026, %v1025
    %v1032 = vsel %vm89, %v1018, 0
    %1034 = vmatpush.bf16.msra.mxu0 0
    %1035 = vmatpush.bf16.msra.mxu0 0
    %1036 = vmatpush.bf16.msra.mxu0 0
    %1037 = vmatpush.bf16.msra.mxu0 0
    %1038 = vmatpush.bf16.msra.mxu0 0
    %1039 = vmatpush.bf16.msra.mxu0 0
    %1040 = vmatpush.bf16.msra.mxu0 %v1028
    %1041 = vmatpush.bf16.msra.mxu0 %v1027
    %1042 = vmatmul.bf16.gmra.mxu0 %v1032
    %v1043 = vpop.f32.mrf.mxu0
    %v1044 = vadd.f32 %v1014, %v1043
    %v1045 = vpop.f32.mrf.mxu0
    %1046 = vdwg.mxu0
    %1047 = vst [vmem:[#allocation6] sm:$0xff] %v1044
    // Predicated region
    $region30: #{tpu_custom_call.1} parent=1 // pred_check
      _
    $region31: #{tpu_custom_call.1} parent=1 // pred_check_branch
      %1049 = sbr.rel (0) target = $region33
    $region32: #{tpu_custom_call.1} parent=1 // pred_region
      %1051 = vsyncadd [#allocation5], 0
      %s1053 = sshll.u32 [#allocation6], 4
      %s1054 = int_to_ptr.vmem [resolvable:$true] %s1053
      %s1055 = sshll.u32 %s6, 4
      %s1056 = int_to_ptr.hbm [resolvable:$true] %s1055
      %1058 = dma.vmem_to_hbm [thread:$0]  %s1054, 128, %s1056, [#allocation5]
    $region33: #{tpu_custom_call.1} parent=1 // pred_fallthru
      _
    // Predicated region
    $region34: #{tpu_custom_call.1} parent=1 // pred_check
      _
    $region35: #{tpu_custom_call.1} parent=1 // pred_check_branch
      %1060 = sbr.rel (0) target = $region37
    $region36: #{tpu_custom_call.1} parent=1 // pred_region
      %1062 = dma.done [#allocation5], 128
    $region37: #{tpu_custom_call.1} parent=1 // pred_fallthru
      _
    %1063 = vsyncpa [#allocation4], 1
    %1064 = vsyncpa [#allocation5], 1

</llo_original>
